<compile_context>
chip_gen: v5e
topology: v5e:2x2
jax: 0.10.0
libtpu: 0.0.40
codegen_flags: <defaults>
</compile_context>

<pallas_src>
import itertools

import jax
import jax.numpy as jnp
from jax.experimental import pallas as pl
from jax.experimental.pallas import tpu as pltpu


# ---------------------------------------------------------------------------
# Fused kernel: decoder_lin + unflatten + decoder_conv + sigmoid
# ---------------------------------------------------------------------------
def _decoder_kernel(x_ref, w1t_ref, b1_ref, w2_ref, b2_ref,
                    w1c_ref, b1c_ref, w2c_ref, b2c_ref, w3_ref, b3_ref,
                    o_ref, h2_scr, p_scr):
    """Whole decoder forward; everything stays in VMEM / vregs.

    x:(B,4) -> h1:(B,128) -> h2:(B,1568) [col = s*32 + c]
      -> p:(B*49,32)  [row = s*B + b]  (relayout via VMEM scratch)
      -> u1:(R,64) -> u2:(R,128) -> u3:(R,192) [col = c*64 + hoff*8 + joff]
      -> sigmoid -> o_ref
    """
    B = x_ref.shape[0]

    # ---- decoder_lin -------------------------------------------------------
    h1 = jnp.dot(x_ref[...], w1t_ref[...], preferred_element_type=jnp.float32)
    h1 = jnp.maximum(h1 + b1_ref[...], 0.0)
    # lin2 weights are bf16 (halves the dominant weight DMA); f32 accumulate.
    h2 = jnp.dot(h1.astype(jnp.bfloat16), w2_ref[...],
                 preferred_element_type=jnp.float32)
    h2 = jnp.maximum(h2 + b2_ref[...], 0.0)                      # (B, 1568)

    # ---- unflatten: (B, 49*32) -> per-pixel matrix (49*B, 32) --------------
    # 49 static 32-lane slices copied through VMEM scratch.  Each slice sits
    # inside one 128-lane group (32 | 128), so this is a handful of cheap
    # sub-vreg loads/stores that hide under the conv-weight DMAs.
    h2_scr[...] = h2
    for s in range(49):
        p_scr[s * B:(s + 1) * B, :] = h2_scr[:, s * 32:(s + 1) * 32]
    p = p_scr[...]                                               # (R, 32)

    # ---- decoder_conv: three ConvTranspose2d(k=2,s=2) as per-pixel matmuls --
    u1 = jnp.dot(p, w1c_ref[...], preferred_element_type=jnp.float32)
    u1 = jnp.maximum(u1 + b1c_ref[...], 0.0)
    u2 = jnp.dot(u1, w2c_ref[...], preferred_element_type=jnp.float32)
    u2 = jnp.maximum(u2 + b2c_ref[...], 0.0)
    u3 = jnp.dot(u2, w3_ref[...], preferred_element_type=jnp.float32)
    u3 = u3 + b3_ref[...]
    # sigmoid(x) = 0.5*(tanh(x/2)+1): one EUP op/elem instead of exp + divide.
    o_ref[...] = 0.5 * (jnp.tanh(0.5 * u3) + 1.0)


def _full_spec(shape):
    """Whole-array-in-VMEM BlockSpec for a grid=(1,) call."""
    return pl.BlockSpec(shape, lambda i: (0,) * len(shape))


# ---------------------------------------------------------------------------
# One-time parameter preprocessing (hoisted out of the jitted forward)
# ---------------------------------------------------------------------------
def prepare_decoder_params(params):
    lin1_w, lin1_b = params["lin1_w"], params["lin1_b"]
    lin2_w, lin2_b = params["lin2_w"], params["lin2_b"]
    dc1_w, dc1_b = params["dc1_w"], params["dc1_b"]
    dc2_w, dc2_b = params["dc2_w"], params["dc2_b"]
    dc3_w, dc3_b = params["dc3_w"], params["dc3_b"]

    # The per-pixel-matmul and bias-only-band formulation hard-codes the
    # 7x7 -> 15 -> 30 -> 60 geometry (kernel 2, stride 2, non-overlapping).
    assert lin1_w.shape == (128, 4) and lin1_b.shape == (128,)
    assert lin2_w.shape == (1568, 128) and lin2_b.shape == (1568,)
    assert dc1_w.shape == (32, 16, 2, 2) and dc1_b.shape == (16,)
    assert dc2_w.shape == (16, 8, 2, 2) and dc2_b.shape == (8,)
    assert dc3_w.shape == (8, 3, 2, 2) and dc3_b.shape == (3,)

    # Linear layers, pre-transposed; lin2 columns permuted to spatial-major
    # (column index = s*32 + c) so (B,1568) slices map directly to the
    # per-pixel (R,32) matrix.  Stored bf16 (it is ~80% of all weight bytes).
    w1t = lin1_w.T                                                        # (4,128)
    b1r = lin1_b.reshape(1, 128)
    w2tp = (lin2_w.reshape(32, 49, 128).transpose(1, 0, 2)
            .reshape(1568, 128).T).astype(jnp.bfloat16)                   # (128,1568) bf16
    b2r = lin2_b.reshape(32, 49).T.reshape(1, 1568)

    # Conv-transpose stack as per-pixel (block-diagonal) matmuls (f32).
    w1c = dc1_w.transpose(0, 2, 3, 1).reshape(32, 64)                     # cols k1*16+co1
    b1c = jnp.tile(dc1_b, 4).reshape(1, 64)
    w2m = dc2_w.transpose(0, 2, 3, 1).reshape(16, 32)                     # cols k2*8+co2
    w2c = jnp.kron(jnp.eye(4, dtype=jnp.float32), w2m)                    # (64,128)
    b2c = jnp.tile(dc2_b, 16).reshape(1, 128)
    w3m = dc3_w.transpose(0, 2, 3, 1).reshape(8, 12)                      # cols k3*3+co3
    w3c = jnp.kron(jnp.eye(16, dtype=jnp.float32), w3m)                   # (128,192)
    b3c = jnp.tile(dc3_b, 64).reshape(1, 192)

    # Permute layer-3 output columns from (k1,k2,k3,c) to (c, hoff, joff) with
    # hoff = 4*k1i+2*k2i+k3i, joff = 4*k1j+2*k2j+k3j, so the final pixel is
    # out[b, c, 8*h7+hoff, 8*w7+joff] and the wrapper NCHW assembly is a single
    # reshape + transpose.
    perm = [0] * 192
    for k1i, k1j, k2i, k2j, k3i, k3j in itertools.product(range(2), repeat=6):
        for c in range(3):
            k1, k2, k3 = 2 * k1i + k1j, 2 * k2i + k2j, 2 * k3i + k3j
            old = k1 * 48 + k2 * 12 + k3 * 3 + c
            new = c * 64 + (4 * k1i + 2 * k2i + k3i) * 8 + (4 * k1j + 2 * k2j + k3j)
            perm[new] = old
    perm = jnp.asarray(perm, dtype=jnp.int32)
    w3p = w3c[:, perm]
    b3p = b3c[:, perm]

    # output_padding strip of conv-1 (15x15 row/col 14) is bias-only, so every
    # downstream band value depends only on (k2, k3, co3): a (3,4,4) tile
    # repeated over the final 60x60 grid.  Precompute the whole background.
    v1 = jnp.maximum(dc1_b, 0.0)                                          # (16,)
    v2 = jnp.maximum(jnp.tensordot(v1, dc2_w, axes=[[0], [0]])
                     + dc2_b[:, None, None], 0.0)                         # (co2,k2i,k2j)
    v3 = jax.nn.sigmoid(jnp.einsum("cij,cdkl->dikjl", v2, dc3_w)
                        + dc3_b[:, None, None, None, None])               # (co3,k2i,k3i,k2j,k3j)
    bg = jnp.tile(v3.reshape(3, 4, 4), (1, 15, 15))                       # (3,60,60)

    return {"w1t": w1t, "b1r": b1r, "w2tp": w2tp, "b2r": b2r,
            "w1c": w1c, "b1c": b1c, "w2c": w2c, "b2c": b2c,
            "w3p": w3p, "b3p": b3p, "bg": bg}


# ---------------------------------------------------------------------------
# Forward pass
# ---------------------------------------------------------------------------
def decoder_forward(x, pp):
    """x: (B, 4) f32 -> (B, 3, 60, 60) f32, matching the PyTorch Decoder."""
    B = x.shape[0]
    R = B * 49
    f32 = jnp.float32

    flops = 2 * B * (4 * 128 + 128 * 1568) + 2 * R * (32 * 64 + 64 * 128 + 128 * 192)
    bytes_acc = (4 * (B * 4 + 4 * 128 + 128 + 1568
                      + 32 * 64 + 64 + 64 * 128 + 128 + 128 * 192 + 192 + R * 192)
                 + 2 * 128 * 1568)

    # One fused kernel: both Linear layers, the unflatten relayout, all three
    # ConvTranspose2d layers and the sigmoid.  grid=(1,), everything resident
    # in VMEM (~0.7 MB of weights + <0.2 MB activations), no HBM round-trips.
    # NOTE: default double-buffering of these tiny whole-array blocks is far
    # below any VMEM limit, so pipeline_mode overrides are not worth the risk.
    # TODO(synk): if B grows large (>= a few hundred), tile R with a leading
    # "parallel" grid axis (row blocks ~256) so v7x's second TensorCore helps
    # and VMEM stays within its 64 MiB; grid=(1,) is best at small B.
    u3 = pl.pallas_call(
        _decoder_kernel,
        out_shape=jax.ShapeDtypeStruct((R, 192), f32),
        grid=(1,),
        in_specs=[_full_spec((B, 4)),
                  _full_spec((4, 128)), _full_spec((1, 128)),
                  _full_spec((128, 1568)), _full_spec((1, 1568)),
                  _full_spec((32, 64)), _full_spec((1, 64)),
                  _full_spec((64, 128)), _full_spec((1, 128)),
                  _full_spec((128, 192)), _full_spec((1, 192))],
        out_specs=_full_spec((R, 192)),
        scratch_shapes=[pltpu.VMEM((B, 1568), f32),
                        pltpu.VMEM((R, 32), f32)],
        compiler_params=pltpu.CompilerParams(dimension_semantics=("arbitrary",)),
        cost_estimate=pl.CostEstimate(flops=flops, transcendentals=R * 192,
                                      bytes_accessed=bytes_acc),
    )(x, pp["w1t"], pp["b1r"], pp["w2tp"], pp["b2r"],
      pp["w1c"], pp["b1c"], pp["w2c"], pp["b2c"], pp["w3p"], pp["b3p"])

    # Final NCHW assembly: one reshape (free) + one transpose + one
    # update-into-broadcast for the bias-only output_padding band.
    # TODO(synk): fold this bit-interleaved (w7 <-> kernel-offset) relayout and
    # the band write into the Pallas kernel once strided sub-vreg stores to the
    # (B,3,60,60) out_ref are cheap in Mosaic.
    main = u3.reshape(7, 7, B, 3, 8, 8)                  # (h7, w7, b, c, hoff, joff)
    main = jnp.transpose(main, (2, 3, 0, 4, 1, 5)).reshape(B, 3, 56, 56)
    out = jnp.broadcast_to(pp["bg"][None], (B, 3, 60, 60))
    out = out.at[:, :, :56, :56].set(main)
    return out


# ---------------------------------------------------------------------------
# Synthetic parameters (shapes match the PyTorch __init__) and references
# ---------------------------------------------------------------------------
def init_params(key):
    ks = jax.random.split(key, 10)

    def u(k, shape, fan_in):
        bound = 1.0 / jnp.sqrt(jnp.float32(fan_in))
        return jax.random.uniform(k, shape, jnp.float32, -bound, bound)

    return {
        "lin1_w": u(ks[0], (128, 4), 4),
        "lin1_b": u(ks[1], (128,), 4),
        "lin2_w": u(ks[2], (7 * 7 * 32, 128), 128),
        "lin2_b": u(ks[3], (7 * 7 * 32,), 128),
        "dc1_w": u(ks[4], (32, 16, 2, 2), 32 * 4),
        "dc1_b": u(ks[5], (16,), 32 * 4),
        "dc2_w": u(ks[6], (16, 8, 2, 2), 16 * 4),
        "dc2_b": u(ks[7], (8,), 16 * 4),
        "dc3_w": u(ks[8], (8, 3, 2, 2), 8 * 4),
        "dc3_b": u(ks[9], (3,), 8 * 4),
    }


def _reference_forward(x, params, *, bf16_lin2=False):
    """Straightforward layered reference (plain jnp) for correctness checks."""
    relu = lambda t: jnp.maximum(t, 0.0)
    B = x.shape[0]
    h = relu(x @ params["lin1_w"].T + params["lin1_b"])
    w2 = params["lin2_w"]
    if bf16_lin2:  # mimic the kernel's bf16 storage of lin2 weight/activation
        h = h.astype(jnp.bfloat16).astype(jnp.float32)
        w2 = w2.astype(jnp.bfloat16).astype(jnp.float32)
    h = relu(h @ w2.T + params["lin2_b"])
    h = h.reshape(B, 32, 7, 7)

    def convT(z, w, b, output_padding):
        Bz, cin, H, W = z.shape
        cout = w.shape[1]
        Ho, Wo = 2 * H + output_padding, 2 * W + output_padding
        out = jnp.broadcast_to(b[None, :, None, None], (Bz, cout, Ho, Wo))
        for ki in range(2):
            for kj in range(2):
                contrib = jnp.einsum("bchw,cd->bdhw", z, w[:, :, ki, kj])
                out = out.at[:, :, ki:2 * H:2, kj:2 * W:2].add(contrib)
        return out

    h = relu(convT(h, params["dc1_w"], params["dc1_b"], 1))
    h = relu(convT(h, params["dc2_w"], params["dc2_b"], 0))
    return jax.nn.sigmoid(convT(h, params["dc3_w"], params["dc3_b"], 0))


if __name__ == "__main__":
    key = jax.random.PRNGKey(0)
    pkey, xkey = jax.random.split(key)
    params = init_params(pkey)
    prepped = prepare_decoder_params(params)   # one-time weight prep (outside jit)

    B = 2
    encoded_space_dim = 4
    x = jax.random.normal(xkey, (B, encoded_space_dim), jnp.float32)

    fwd = jax.jit(decoder_forward)
    out = jax.block_until_ready(fwd(x, prepped))

    assert out.shape == (B, 3, 60, 60), out.shape
    assert bool(jnp.all(jnp.isfinite(out)))
    assert bool(jnp.all((out >= -1e-6) & (out <= 1.0 + 1e-6)))   # sigmoid range

    # Tight check: reference with the same bf16 rounding of the lin2 weights
    # (validates the kernel math itself, not masked by quantization slack).
    ref_bf16 = _reference_forward(x, params, bf16_lin2=True)
    err_tight = float(jnp.max(jnp.abs(out - ref_bf16)))
    assert err_tight < 1e-3, err_tight

    # Spec check: pure-f32 PyTorch-equivalent reference (slack covers the
    # intentional bf16 storage of the 802 KB lin2 weight matrix).
    ref_f32 = _reference_forward(x, params)
    err_full = float(jnp.max(jnp.abs(out - ref_f32)))
    assert err_full < 2e-2, err_full

    print("KERNEL_OK")
</pallas_src>

<mosaic_0001>
module attributes {stable_mosaic.version = 11 : i64} {
  func.func @_decoder_kernel(%arg0: i32, %arg1: memref<2x4xf32, #tpu.memory_space<vmem>>, %arg2: memref<4x128xf32, #tpu.memory_space<vmem>>, %arg3: memref<1x128xf32, #tpu.memory_space<vmem>>, %arg4: memref<128x1568xbf16, #tpu.memory_space<vmem>>, %arg5: memref<1x1568xf32, #tpu.memory_space<vmem>>, %arg6: memref<32x64xf32, #tpu.memory_space<vmem>>, %arg7: memref<1x64xf32, #tpu.memory_space<vmem>>, %arg8: memref<64x128xf32, #tpu.memory_space<vmem>>, %arg9: memref<1x128xf32, #tpu.memory_space<vmem>>, %arg10: memref<128x192xf32, #tpu.memory_space<vmem>>, %arg11: memref<1x192xf32, #tpu.memory_space<vmem>>, %arg12: memref<98x192xf32, #tpu.memory_space<vmem>>, %arg13: memref<2x1568xf32, #tpu.memory_space<vmem>>, %arg14: memref<98x32xf32, #tpu.memory_space<vmem>>) attributes {dimension_semantics = [#tpu.dimension_semantics<arbitrary>], iteration_bounds = array<i64: 1>, scalar_prefetch = 0 : i64, scratch_operands = 2 : i64, tpu.core_type = #tpu.core_type<tc>, window_params = [{pipeline_mode = #tpu.pipeline_mode<synchronous>, transform_indices = @transform_0, window_bounds = array<i64: 2, 4>}, {pipeline_mode = #tpu.pipeline_mode<synchronous>, transform_indices = @transform_1, window_bounds = array<i64: 4, 128>}, {pipeline_mode = #tpu.pipeline_mode<synchronous>, transform_indices = @transform_2, window_bounds = array<i64: 1, 128>}, {pipeline_mode = #tpu.pipeline_mode<synchronous>, transform_indices = @transform_3, window_bounds = array<i64: 128, 1568>}, {pipeline_mode = #tpu.pipeline_mode<synchronous>, transform_indices = @transform_4, window_bounds = array<i64: 1, 1568>}, {pipeline_mode = #tpu.pipeline_mode<synchronous>, transform_indices = @transform_5, window_bounds = array<i64: 32, 64>}, {pipeline_mode = #tpu.pipeline_mode<synchronous>, transform_indices = @transform_6, window_bounds = array<i64: 1, 64>}, {pipeline_mode = #tpu.pipeline_mode<synchronous>, transform_indices = @transform_7, window_bounds = array<i64: 64, 128>}, {pipeline_mode = #tpu.pipeline_mode<synchronous>, transform_indices = @transform_8, window_bounds = array<i64: 1, 128>}, {pipeline_mode = #tpu.pipeline_mode<synchronous>, transform_indices = @transform_9, window_bounds = array<i64: 128, 192>}, {pipeline_mode = #tpu.pipeline_mode<synchronous>, transform_indices = @transform_10, window_bounds = array<i64: 1, 192>}, {pipeline_mode = #tpu.pipeline_mode<synchronous>, transform_indices = @transform_11, window_bounds = array<i64: 98, 192>}]} {
    %c0 = arith.constant 0 : index
    %c0_0 = arith.constant 0 : index
    %0 = vector.load %arg1[%c0, %c0_0] : memref<2x4xf32, #tpu.memory_space<vmem>>, vector<2x4xf32>
    %c0_1 = arith.constant 0 : index
    %c0_2 = arith.constant 0 : index
    %1 = vector.load %arg2[%c0_1, %c0_2] : memref<4x128xf32, #tpu.memory_space<vmem>>, vector<4x128xf32>
    %cst = arith.constant dense<0.000000e+00> : vector<2x128xf32>
    %2 = tpu.matmul %0, %1, %cst {dimension_numbers = #tpu.dot_dimension_numbers<[1], [0], [0], [1], [0, 0, 1, 1], [], []>} : vector<2x4xf32>, vector<4x128xf32>, vector<2x128xf32> -> vector<2x128xf32>
    %c0_3 = arith.constant 0 : index
    %c0_4 = arith.constant 0 : index
    %3 = vector.load %arg3[%c0_3, %c0_4] : memref<1x128xf32, #tpu.memory_space<vmem>>, vector<1x128xf32>
    %4 = vector.broadcast %3 : vector<1x128xf32> to vector<2x128xf32>
    %5 = arith.addf %2, %4 : vector<2x128xf32>
    %cst_5 = arith.constant 0.000000e+00 : f32
    %6 = vector.broadcast %cst_5 : f32 to vector<2x128xf32>
    %7 = arith.maximumf %5, %6 : vector<2x128xf32>
    %8 = arith.truncf %7 : vector<2x128xf32> to vector<2x128xbf16>
    %c0_6 = arith.constant 0 : index
    %c0_7 = arith.constant 0 : index
    %9 = vector.load %arg4[%c0_6, %c0_7] : memref<128x1568xbf16, #tpu.memory_space<vmem>>, vector<128x1568xbf16>
    %cst_8 = arith.constant dense<0.000000e+00> : vector<2x1568xf32>
    %10 = tpu.matmul %8, %9, %cst_8 {dimension_numbers = #tpu.dot_dimension_numbers<[1], [0], [0], [1], [0, 0, 1, 1], [], []>} : vector<2x128xbf16>, vector<128x1568xbf16>, vector<2x1568xf32> -> vector<2x1568xf32>
    %c0_9 = arith.constant 0 : index
    %c0_10 = arith.constant 0 : index
    %11 = vector.load %arg5[%c0_9, %c0_10] : memref<1x1568xf32, #tpu.memory_space<vmem>>, vector<1x1568xf32>
    %12 = vector.broadcast %11 : vector<1x1568xf32> to vector<2x1568xf32>
    %13 = arith.addf %10, %12 : vector<2x1568xf32>
    %cst_11 = arith.constant 0.000000e+00 : f32
    %14 = vector.broadcast %cst_11 : f32 to vector<2x1568xf32>
    %15 = arith.maximumf %13, %14 : vector<2x1568xf32>
    %c0_12 = arith.constant 0 : index
    %c0_13 = arith.constant 0 : index
    %16 = vector.load %arg13[%c0_12, %c0_13] : memref<2x1568xf32, #tpu.memory_space<vmem>>, vector<2x1568xf32>
    tpu.vector_store %arg13[%c0_12, %c0_13], %15 {strides = array<i32>} : memref<2x1568xf32, #tpu.memory_space<vmem>>, vector<2x1568xf32>,
    %c0_14 = arith.constant 0 : index
    %c0_15 = arith.constant 0 : index
    %17 = vector.load %arg13[%c0_14, %c0_15] : memref<2x1568xf32, #tpu.memory_space<vmem>>, vector<2x32xf32>
    %c0_16 = arith.constant 0 : index
    %c0_17 = arith.constant 0 : index
    %18 = vector.load %arg14[%c0_16, %c0_17] : memref<98x32xf32, #tpu.memory_space<vmem>>, vector<2x32xf32>
    tpu.vector_store %arg14[%c0_16, %c0_17], %17 {strides = array<i32>} : memref<98x32xf32, #tpu.memory_space<vmem>>, vector<2x32xf32>,
    %c0_18 = arith.constant 0 : index
    %c32 = arith.constant 32 : index
    %19 = vector.load %arg13[%c0_18, %c32] : memref<2x1568xf32, #tpu.memory_space<vmem>>, vector<2x32xf32>
    %c2 = arith.constant 2 : index
    %c0_19 = arith.constant 0 : index
    %20 = vector.load %arg14[%c2, %c0_19] : memref<98x32xf32, #tpu.memory_space<vmem>>, vector<2x32xf32>
    tpu.vector_store %arg14[%c2, %c0_19], %19 {strides = array<i32>} : memref<98x32xf32, #tpu.memory_space<vmem>>, vector<2x32xf32>,
    %c0_20 = arith.constant 0 : index
    %c64 = arith.constant 64 : index
    %21 = vector.load %arg13[%c0_20, %c64] : memref<2x1568xf32, #tpu.memory_space<vmem>>, vector<2x32xf32>
    %c4 = arith.constant 4 : index
    %c0_21 = arith.constant 0 : index
    %22 = vector.load %arg14[%c4, %c0_21] : memref<98x32xf32, #tpu.memory_space<vmem>>, vector<2x32xf32>
    tpu.vector_store %arg14[%c4, %c0_21], %21 {strides = array<i32>} : memref<98x32xf32, #tpu.memory_space<vmem>>, vector<2x32xf32>,
    %c0_22 = arith.constant 0 : index
    %c96 = arith.constant 96 : index
    %23 = vector.load %arg13[%c0_22, %c96] : memref<2x1568xf32, #tpu.memory_space<vmem>>, vector<2x32xf32>
    %c6 = arith.constant 6 : index
    %c0_23 = arith.constant 0 : index
    %24 = vector.load %arg14[%c6, %c0_23] : memref<98x32xf32, #tpu.memory_space<vmem>>, vector<2x32xf32>
    tpu.vector_store %arg14[%c6, %c0_23], %23 {strides = array<i32>} : memref<98x32xf32, #tpu.memory_space<vmem>>, vector<2x32xf32>,
    %c0_24 = arith.constant 0 : index
    %c128 = arith.constant 128 : index
    %25 = vector.load %arg13[%c0_24, %c128] : memref<2x1568xf32, #tpu.memory_space<vmem>>, vector<2x32xf32>
    %c8 = arith.constant 8 : index
    %c0_25 = arith.constant 0 : index
    %26 = vector.load %arg14[%c8, %c0_25] : memref<98x32xf32, #tpu.memory_space<vmem>>, vector<2x32xf32>
    tpu.vector_store %arg14[%c8, %c0_25], %25 {strides = array<i32>} : memref<98x32xf32, #tpu.memory_space<vmem>>, vector<2x32xf32>,
    %c0_26 = arith.constant 0 : index
    %c160 = arith.constant 160 : index
    %27 = vector.load %arg13[%c0_26, %c160] : memref<2x1568xf32, #tpu.memory_space<vmem>>, vector<2x32xf32>
    %c10 = arith.constant 10 : index
    %c0_27 = arith.constant 0 : index
    %28 = vector.load %arg14[%c10, %c0_27] : memref<98x32xf32, #tpu.memory_space<vmem>>, vector<2x32xf32>
    tpu.vector_store %arg14[%c10, %c0_27], %27 {strides = array<i32>} : memref<98x32xf32, #tpu.memory_space<vmem>>, vector<2x32xf32>,
    %c0_28 = arith.constant 0 : index
    %c192 = arith.constant 192 : index
    %29 = vector.load %arg13[%c0_28, %c192] : memref<2x1568xf32, #tpu.memory_space<vmem>>, vector<2x32xf32>
    %c12 = arith.constant 12 : index
    %c0_29 = arith.constant 0 : index
    %30 = vector.load %arg14[%c12, %c0_29] : memref<98x32xf32, #tpu.memory_space<vmem>>, vector<2x32xf32>
    tpu.vector_store %arg14[%c12, %c0_29], %29 {strides = array<i32>} : memref<98x32xf32, #tpu.memory_space<vmem>>, vector<2x32xf32>,
    %c0_30 = arith.constant 0 : index
    %c224 = arith.constant 224 : index
    %31 = vector.load %arg13[%c0_30, %c224] : memref<2x1568xf32, #tpu.memory_space<vmem>>, vector<2x32xf32>
    %c14 = arith.constant 14 : index
    %c0_31 = arith.constant 0 : index
    %32 = vector.load %arg14[%c14, %c0_31] : memref<98x32xf32, #tpu.memory_space<vmem>>, vector<2x32xf32>
    tpu.vector_store %arg14[%c14, %c0_31], %31 {strides = array<i32>} : memref<98x32xf32, #tpu.memory_space<vmem>>, vector<2x32xf32>,
    %c0_32 = arith.constant 0 : index
    %c256 = arith.constant 256 : index
    %33 = vector.load %arg13[%c0_32, %c256] : memref<2x1568xf32, #tpu.memory_space<vmem>>, vector<2x32xf32>
    %c16 = arith.constant 16 : index
    %c0_33 = arith.constant 0 : index
    %34 = vector.load %arg14[%c16, %c0_33] : memref<98x32xf32, #tpu.memory_space<vmem>>, vector<2x32xf32>
    tpu.vector_store %arg14[%c16, %c0_33], %33 {strides = array<i32>} : memref<98x32xf32, #tpu.memory_space<vmem>>, vector<2x32xf32>,
    %c0_34 = arith.constant 0 : index
    %c288 = arith.constant 288 : index
    %35 = vector.load %arg13[%c0_34, %c288] : memref<2x1568xf32, #tpu.memory_space<vmem>>, vector<2x32xf32>
    %c18 = arith.constant 18 : index
    %c0_35 = arith.constant 0 : index
    %36 = vector.load %arg14[%c18, %c0_35] : memref<98x32xf32, #tpu.memory_space<vmem>>, vector<2x32xf32>
    tpu.vector_store %arg14[%c18, %c0_35], %35 {strides = array<i32>} : memref<98x32xf32, #tpu.memory_space<vmem>>, vector<2x32xf32>,
    %c0_36 = arith.constant 0 : index
    %c320 = arith.constant 320 : index
    %37 = vector.load %arg13[%c0_36, %c320] : memref<2x1568xf32, #tpu.memory_space<vmem>>, vector<2x32xf32>
    %c20 = arith.constant 20 : index
    %c0_37 = arith.constant 0 : index
    %38 = vector.load %arg14[%c20, %c0_37] : memref<98x32xf32, #tpu.memory_space<vmem>>, vector<2x32xf32>
    tpu.vector_store %arg14[%c20, %c0_37], %37 {strides = array<i32>} : memref<98x32xf32, #tpu.memory_space<vmem>>, vector<2x32xf32>,
    %c0_38 = arith.constant 0 : index
    %c352 = arith.constant 352 : index
    %39 = vector.load %arg13[%c0_38, %c352] : memref<2x1568xf32, #tpu.memory_space<vmem>>, vector<2x32xf32>
    %c22 = arith.constant 22 : index
    %c0_39 = arith.constant 0 : index
    %40 = vector.load %arg14[%c22, %c0_39] : memref<98x32xf32, #tpu.memory_space<vmem>>, vector<2x32xf32>
    tpu.vector_store %arg14[%c22, %c0_39], %39 {strides = array<i32>} : memref<98x32xf32, #tpu.memory_space<vmem>>, vector<2x32xf32>,
    %c0_40 = arith.constant 0 : index
    %c384 = arith.constant 384 : index
    %41 = vector.load %arg13[%c0_40, %c384] : memref<2x1568xf32, #tpu.memory_space<vmem>>, vector<2x32xf32>
    %c24 = arith.constant 24 : index
    %c0_41 = arith.constant 0 : index
    %42 = vector.load %arg14[%c24, %c0_41] : memref<98x32xf32, #tpu.memory_space<vmem>>, vector<2x32xf32>
    tpu.vector_store %arg14[%c24, %c0_41], %41 {strides = array<i32>} : memref<98x32xf32, #tpu.memory_space<vmem>>, vector<2x32xf32>,
    %c0_42 = arith.constant 0 : index
    %c416 = arith.constant 416 : index
    %43 = vector.load %arg13[%c0_42, %c416] : memref<2x1568xf32, #tpu.memory_space<vmem>>, vector<2x32xf32>
    %c26 = arith.constant 26 : index
    %c0_43 = arith.constant 0 : index
    %44 = vector.load %arg14[%c26, %c0_43] : memref<98x32xf32, #tpu.memory_space<vmem>>, vector<2x32xf32>
    tpu.vector_store %arg14[%c26, %c0_43], %43 {strides = array<i32>} : memref<98x32xf32, #tpu.memory_space<vmem>>, vector<2x32xf32>,
    %c0_44 = arith.constant 0 : index
    %c448 = arith.constant 448 : index
    %45 = vector.load %arg13[%c0_44, %c448] : memref<2x1568xf32, #tpu.memory_space<vmem>>, vector<2x32xf32>
    %c28 = arith.constant 28 : index
    %c0_45 = arith.constant 0 : index
    %46 = vector.load %arg14[%c28, %c0_45] : memref<98x32xf32, #tpu.memory_space<vmem>>, vector<2x32xf32>
    tpu.vector_store %arg14[%c28, %c0_45], %45 {strides = array<i32>} : memref<98x32xf32, #tpu.memory_space<vmem>>, vector<2x32xf32>,
    %c0_46 = arith.constant 0 : index
    %c480 = arith.constant 480 : index
    %47 = vector.load %arg13[%c0_46, %c480] : memref<2x1568xf32, #tpu.memory_space<vmem>>, vector<2x32xf32>
    %c30 = arith.constant 30 : index
    %c0_47 = arith.constant 0 : index
    %48 = vector.load %arg14[%c30, %c0_47] : memref<98x32xf32, #tpu.memory_space<vmem>>, vector<2x32xf32>
    tpu.vector_store %arg14[%c30, %c0_47], %47 {strides = array<i32>} : memref<98x32xf32, #tpu.memory_space<vmem>>, vector<2x32xf32>,
    %c0_48 = arith.constant 0 : index
    %c512 = arith.constant 512 : index
    %49 = vector.load %arg13[%c0_48, %c512] : memref<2x1568xf32, #tpu.memory_space<vmem>>, vector<2x32xf32>
    %c32_49 = arith.constant 32 : index
    %c0_50 = arith.constant 0 : index
    %50 = vector.load %arg14[%c32_49, %c0_50] : memref<98x32xf32, #tpu.memory_space<vmem>>, vector<2x32xf32>
    tpu.vector_store %arg14[%c32_49, %c0_50], %49 {strides = array<i32>} : memref<98x32xf32, #tpu.memory_space<vmem>>, vector<2x32xf32>,
    %c0_51 = arith.constant 0 : index
    %c544 = arith.constant 544 : index
    %51 = vector.load %arg13[%c0_51, %c544] : memref<2x1568xf32, #tpu.memory_space<vmem>>, vector<2x32xf32>
    %c34 = arith.constant 34 : index
    %c0_52 = arith.constant 0 : index
    %52 = vector.load %arg14[%c34, %c0_52] : memref<98x32xf32, #tpu.memory_space<vmem>>, vector<2x32xf32>
    tpu.vector_store %arg14[%c34, %c0_52], %51 {strides = array<i32>} : memref<98x32xf32, #tpu.memory_space<vmem>>, vector<2x32xf32>,
    %c0_53 = arith.constant 0 : index
    %c576 = arith.constant 576 : index
    %53 = vector.load %arg13[%c0_53, %c576] : memref<2x1568xf32, #tpu.memory_space<vmem>>, vector<2x32xf32>
    %c36 = arith.constant 36 : index
    %c0_54 = arith.constant 0 : index
    %54 = vector.load %arg14[%c36, %c0_54] : memref<98x32xf32, #tpu.memory_space<vmem>>, vector<2x32xf32>
    tpu.vector_store %arg14[%c36, %c0_54], %53 {strides = array<i32>} : memref<98x32xf32, #tpu.memory_space<vmem>>, vector<2x32xf32>,
    %c0_55 = arith.constant 0 : index
    %c608 = arith.constant 608 : index
    %55 = vector.load %arg13[%c0_55, %c608] : memref<2x1568xf32, #tpu.memory_space<vmem>>, vector<2x32xf32>
    %c38 = arith.constant 38 : index
    %c0_56 = arith.constant 0 : index
    %56 = vector.load %arg14[%c38, %c0_56] : memref<98x32xf32, #tpu.memory_space<vmem>>, vector<2x32xf32>
    tpu.vector_store %arg14[%c38, %c0_56], %55 {strides = array<i32>} : memref<98x32xf32, #tpu.memory_space<vmem>>, vector<2x32xf32>,
    %c0_57 = arith.constant 0 : index
    %c640 = arith.constant 640 : index
    %57 = vector.load %arg13[%c0_57, %c640] : memref<2x1568xf32, #tpu.memory_space<vmem>>, vector<2x32xf32>
    %c40 = arith.constant 40 : index
    %c0_58 = arith.constant 0 : index
    %58 = vector.load %arg14[%c40, %c0_58] : memref<98x32xf32, #tpu.memory_space<vmem>>, vector<2x32xf32>
    tpu.vector_store %arg14[%c40, %c0_58], %57 {strides = array<i32>} : memref<98x32xf32, #tpu.memory_space<vmem>>, vector<2x32xf32>,
    %c0_59 = arith.constant 0 : index
    %c672 = arith.constant 672 : index
    %59 = vector.load %arg13[%c0_59, %c672] : memref<2x1568xf32, #tpu.memory_space<vmem>>, vector<2x32xf32>
    %c42 = arith.constant 42 : index
    %c0_60 = arith.constant 0 : index
    %60 = vector.load %arg14[%c42, %c0_60] : memref<98x32xf32, #tpu.memory_space<vmem>>, vector<2x32xf32>
    tpu.vector_store %arg14[%c42, %c0_60], %59 {strides = array<i32>} : memref<98x32xf32, #tpu.memory_space<vmem>>, vector<2x32xf32>,
    %c0_61 = arith.constant 0 : index
    %c704 = arith.constant 704 : index
    %61 = vector.load %arg13[%c0_61, %c704] : memref<2x1568xf32, #tpu.memory_space<vmem>>, vector<2x32xf32>
    %c44 = arith.constant 44 : index
    %c0_62 = arith.constant 0 : index
    %62 = vector.load %arg14[%c44, %c0_62] : memref<98x32xf32, #tpu.memory_space<vmem>>, vector<2x32xf32>
    tpu.vector_store %arg14[%c44, %c0_62], %61 {strides = array<i32>} : memref<98x32xf32, #tpu.memory_space<vmem>>, vector<2x32xf32>,
    %c0_63 = arith.constant 0 : index
    %c736 = arith.constant 736 : index
    %63 = vector.load %arg13[%c0_63, %c736] : memref<2x1568xf32, #tpu.memory_space<vmem>>, vector<2x32xf32>
    %c46 = arith.constant 46 : index
    %c0_64 = arith.constant 0 : index
    %64 = vector.load %arg14[%c46, %c0_64] : memref<98x32xf32, #tpu.memory_space<vmem>>, vector<2x32xf32>
    tpu.vector_store %arg14[%c46, %c0_64], %63 {strides = array<i32>} : memref<98x32xf32, #tpu.memory_space<vmem>>, vector<2x32xf32>,
    %c0_65 = arith.constant 0 : index
    %c768 = arith.constant 768 : index
    %65 = vector.load %arg13[%c0_65, %c768] : memref<2x1568xf32, #tpu.memory_space<vmem>>, vector<2x32xf32>
    %c48 = arith.constant 48 : index
    %c0_66 = arith.constant 0 : index
    %66 = vector.load %arg14[%c48, %c0_66] : memref<98x32xf32, #tpu.memory_space<vmem>>, vector<2x32xf32>
    tpu.vector_store %arg14[%c48, %c0_66], %65 {strides = array<i32>} : memref<98x32xf32, #tpu.memory_space<vmem>>, vector<2x32xf32>,
    %c0_67 = arith.constant 0 : index
    %c800 = arith.constant 800 : index
    %67 = vector.load %arg13[%c0_67, %c800] : memref<2x1568xf32, #tpu.memory_space<vmem>>, vector<2x32xf32>
    %c50 = arith.constant 50 : index
    %c0_68 = arith.constant 0 : index
    %68 = vector.load %arg14[%c50, %c0_68] : memref<98x32xf32, #tpu.memory_space<vmem>>, vector<2x32xf32>
    tpu.vector_store %arg14[%c50, %c0_68], %67 {strides = array<i32>} : memref<98x32xf32, #tpu.memory_space<vmem>>, vector<2x32xf32>,
    %c0_69 = arith.constant 0 : index
    %c832 = arith.constant 832 : index
    %69 = vector.load %arg13[%c0_69, %c832] : memref<2x1568xf32, #tpu.memory_space<vmem>>, vector<2x32xf32>
    %c52 = arith.constant 52 : index
    %c0_70 = arith.constant 0 : index
    %70 = vector.load %arg14[%c52, %c0_70] : memref<98x32xf32, #tpu.memory_space<vmem>>, vector<2x32xf32>
    tpu.vector_store %arg14[%c52, %c0_70], %69 {strides = array<i32>} : memref<98x32xf32, #tpu.memory_space<vmem>>, vector<2x32xf32>,
    %c0_71 = arith.constant 0 : index
    %c864 = arith.constant 864 : index
    %71 = vector.load %arg13[%c0_71, %c864] : memref<2x1568xf32, #tpu.memory_space<vmem>>, vector<2x32xf32>
    %c54 = arith.constant 54 : index
    %c0_72 = arith.constant 0 : index
    %72 = vector.load %arg14[%c54, %c0_72] : memref<98x32xf32, #tpu.memory_space<vmem>>, vector<2x32xf32>
    tpu.vector_store %arg14[%c54, %c0_72], %71 {strides = array<i32>} : memref<98x32xf32, #tpu.memory_space<vmem>>, vector<2x32xf32>,
    %c0_73 = arith.constant 0 : index
    %c896 = arith.constant 896 : index
    %73 = vector.load %arg13[%c0_73, %c896] : memref<2x1568xf32, #tpu.memory_space<vmem>>, vector<2x32xf32>
    %c56 = arith.constant 56 : index
    %c0_74 = arith.constant 0 : index
    %74 = vector.load %arg14[%c56, %c0_74] : memref<98x32xf32, #tpu.memory_space<vmem>>, vector<2x32xf32>
    tpu.vector_store %arg14[%c56, %c0_74], %73 {strides = array<i32>} : memref<98x32xf32, #tpu.memory_space<vmem>>, vector<2x32xf32>,
    %c0_75 = arith.constant 0 : index
    %c928 = arith.constant 928 : index
    %75 = vector.load %arg13[%c0_75, %c928] : memref<2x1568xf32, #tpu.memory_space<vmem>>, vector<2x32xf32>
    %c58 = arith.constant 58 : index
    %c0_76 = arith.constant 0 : index
    %76 = vector.load %arg14[%c58, %c0_76] : memref<98x32xf32, #tpu.memory_space<vmem>>, vector<2x32xf32>
    tpu.vector_store %arg14[%c58, %c0_76], %75 {strides = array<i32>} : memref<98x32xf32, #tpu.memory_space<vmem>>, vector<2x32xf32>,
    %c0_77 = arith.constant 0 : index
    %c960 = arith.constant 960 : index
    %77 = vector.load %arg13[%c0_77, %c960] : memref<2x1568xf32, #tpu.memory_space<vmem>>, vector<2x32xf32>
    %c60 = arith.constant 60 : index
    %c0_78 = arith.constant 0 : index
    %78 = vector.load %arg14[%c60, %c0_78] : memref<98x32xf32, #tpu.memory_space<vmem>>, vector<2x32xf32>
    tpu.vector_store %arg14[%c60, %c0_78], %77 {strides = array<i32>} : memref<98x32xf32, #tpu.memory_space<vmem>>, vector<2x32xf32>,
    %c0_79 = arith.constant 0 : index
    %c992 = arith.constant 992 : index
    %79 = vector.load %arg13[%c0_79, %c992] : memref<2x1568xf32, #tpu.memory_space<vmem>>, vector<2x32xf32>
    %c62 = arith.constant 62 : index
    %c0_80 = arith.constant 0 : index
    %80 = vector.load %arg14[%c62, %c0_80] : memref<98x32xf32, #tpu.memory_space<vmem>>, vector<2x32xf32>
    tpu.vector_store %arg14[%c62, %c0_80], %79 {strides = array<i32>} : memref<98x32xf32, #tpu.memory_space<vmem>>, vector<2x32xf32>,
    %c0_81 = arith.constant 0 : index
    %c1024 = arith.constant 1024 : index
    %81 = vector.load %arg13[%c0_81, %c1024] : memref<2x1568xf32, #tpu.memory_space<vmem>>, vector<2x32xf32>
    %c64_82 = arith.constant 64 : index
    %c0_83 = arith.constant 0 : index
    %82 = vector.load %arg14[%c64_82, %c0_83] : memref<98x32xf32, #tpu.memory_space<vmem>>, vector<2x32xf32>
    tpu.vector_store %arg14[%c64_82, %c0_83], %81 {strides = array<i32>} : memref<98x32xf32, #tpu.memory_space<vmem>>, vector<2x32xf32>,
    %c0_84 = arith.constant 0 : index
    %c1056 = arith.constant 1056 : index
    %83 = vector.load %arg13[%c0_84, %c1056] : memref<2x1568xf32, #tpu.memory_space<vmem>>, vector<2x32xf32>
    %c66 = arith.constant 66 : index
    %c0_85 = arith.constant 0 : index
    %84 = vector.load %arg14[%c66, %c0_85] : memref<98x32xf32, #tpu.memory_space<vmem>>, vector<2x32xf32>
    tpu.vector_store %arg14[%c66, %c0_85], %83 {strides = array<i32>} : memref<98x32xf32, #tpu.memory_space<vmem>>, vector<2x32xf32>,
    %c0_86 = arith.constant 0 : index
    %c1088 = arith.constant 1088 : index
    %85 = vector.load %arg13[%c0_86, %c1088] : memref<2x1568xf32, #tpu.memory_space<vmem>>, vector<2x32xf32>
    %c68 = arith.constant 68 : index
    %c0_87 = arith.constant 0 : index
    %86 = vector.load %arg14[%c68, %c0_87] : memref<98x32xf32, #tpu.memory_space<vmem>>, vector<2x32xf32>
    tpu.vector_store %arg14[%c68, %c0_87], %85 {strides = array<i32>} : memref<98x32xf32, #tpu.memory_space<vmem>>, vector<2x32xf32>,
    %c0_88 = arith.constant 0 : index
    %c1120 = arith.constant 1120 : index
    %87 = vector.load %arg13[%c0_88, %c1120] : memref<2x1568xf32, #tpu.memory_space<vmem>>, vector<2x32xf32>
    %c70 = arith.constant 70 : index
    %c0_89 = arith.constant 0 : index
    %88 = vector.load %arg14[%c70, %c0_89] : memref<98x32xf32, #tpu.memory_space<vmem>>, vector<2x32xf32>
    tpu.vector_store %arg14[%c70, %c0_89], %87 {strides = array<i32>} : memref<98x32xf32, #tpu.memory_space<vmem>>, vector<2x32xf32>,
    %c0_90 = arith.constant 0 : index
    %c1152 = arith.constant 1152 : index
    %89 = vector.load %arg13[%c0_90, %c1152] : memref<2x1568xf32, #tpu.memory_space<vmem>>, vector<2x32xf32>
    %c72 = arith.constant 72 : index
    %c0_91 = arith.constant 0 : index
    %90 = vector.load %arg14[%c72, %c0_91] : memref<98x32xf32, #tpu.memory_space<vmem>>, vector<2x32xf32>
    tpu.vector_store %arg14[%c72, %c0_91], %89 {strides = array<i32>} : memref<98x32xf32, #tpu.memory_space<vmem>>, vector<2x32xf32>,
    %c0_92 = arith.constant 0 : index
    %c1184 = arith.constant 1184 : index
    %91 = vector.load %arg13[%c0_92, %c1184] : memref<2x1568xf32, #tpu.memory_space<vmem>>, vector<2x32xf32>
    %c74 = arith.constant 74 : index
    %c0_93 = arith.constant 0 : index
    %92 = vector.load %arg14[%c74, %c0_93] : memref<98x32xf32, #tpu.memory_space<vmem>>, vector<2x32xf32>
    tpu.vector_store %arg14[%c74, %c0_93], %91 {strides = array<i32>} : memref<98x32xf32, #tpu.memory_space<vmem>>, vector<2x32xf32>,
    %c0_94 = arith.constant 0 : index
    %c1216 = arith.constant 1216 : index
    %93 = vector.load %arg13[%c0_94, %c1216] : memref<2x1568xf32, #tpu.memory_space<vmem>>, vector<2x32xf32>
    %c76 = arith.constant 76 : index
    %c0_95 = arith.constant 0 : index
    %94 = vector.load %arg14[%c76, %c0_95] : memref<98x32xf32, #tpu.memory_space<vmem>>, vector<2x32xf32>
    tpu.vector_store %arg14[%c76, %c0_95], %93 {strides = array<i32>} : memref<98x32xf32, #tpu.memory_space<vmem>>, vector<2x32xf32>,
    %c0_96 = arith.constant 0 : index
    %c1248 = arith.constant 1248 : index
    %95 = vector.load %arg13[%c0_96, %c1248] : memref<2x1568xf32, #tpu.memory_space<vmem>>, vector<2x32xf32>
    %c78 = arith.constant 78 : index
    %c0_97 = arith.constant 0 : index
    %96 = vector.load %arg14[%c78, %c0_97] : memref<98x32xf32, #tpu.memory_space<vmem>>, vector<2x32xf32>
    tpu.vector_store %arg14[%c78, %c0_97], %95 {strides = array<i32>} : memref<98x32xf32, #tpu.memory_space<vmem>>, vector<2x32xf32>,
    %c0_98 = arith.constant 0 : index
    %c1280 = arith.constant 1280 : index
    %97 = vector.load %arg13[%c0_98, %c1280] : memref<2x1568xf32, #tpu.memory_space<vmem>>, vector<2x32xf32>
    %c80 = arith.constant 80 : index
    %c0_99 = arith.constant 0 : index
    %98 = vector.load %arg14[%c80, %c0_99] : memref<98x32xf32, #tpu.memory_space<vmem>>, vector<2x32xf32>
    tpu.vector_store %arg14[%c80, %c0_99], %97 {strides = array<i32>} : memref<98x32xf32, #tpu.memory_space<vmem>>, vector<2x32xf32>,
    %c0_100 = arith.constant 0 : index
    %c1312 = arith.constant 1312 : index
    %99 = vector.load %arg13[%c0_100, %c1312] : memref<2x1568xf32, #tpu.memory_space<vmem>>, vector<2x32xf32>
    %c82 = arith.constant 82 : index
    %c0_101 = arith.constant 0 : index
    %100 = vector.load %arg14[%c82, %c0_101] : memref<98x32xf32, #tpu.memory_space<vmem>>, vector<2x32xf32>
    tpu.vector_store %arg14[%c82, %c0_101], %99 {strides = array<i32>} : memref<98x32xf32, #tpu.memory_space<vmem>>, vector<2x32xf32>,
    %c0_102 = arith.constant 0 : index
    %c1344 = arith.constant 1344 : index
    %101 = vector.load %arg13[%c0_102, %c1344] : memref<2x1568xf32, #tpu.memory_space<vmem>>, vector<2x32xf32>
    %c84 = arith.constant 84 : index
    %c0_103 = arith.constant 0 : index
    %102 = vector.load %arg14[%c84, %c0_103] : memref<98x32xf32, #tpu.memory_space<vmem>>, vector<2x32xf32>
    tpu.vector_store %arg14[%c84, %c0_103], %101 {strides = array<i32>} : memref<98x32xf32, #tpu.memory_space<vmem>>, vector<2x32xf32>,
    %c0_104 = arith.constant 0 : index
    %c1376 = arith.constant 1376 : index
    %103 = vector.load %arg13[%c0_104, %c1376] : memref<2x1568xf32, #tpu.memory_space<vmem>>, vector<2x32xf32>
    %c86 = arith.constant 86 : index
    %c0_105 = arith.constant 0 : index
    %104 = vector.load %arg14[%c86, %c0_105] : memref<98x32xf32, #tpu.memory_space<vmem>>, vector<2x32xf32>
    tpu.vector_store %arg14[%c86, %c0_105], %103 {strides = array<i32>} : memref<98x32xf32, #tpu.memory_space<vmem>>, vector<2x32xf32>,
    %c0_106 = arith.constant 0 : index
    %c1408 = arith.constant 1408 : index
    %105 = vector.load %arg13[%c0_106, %c1408] : memref<2x1568xf32, #tpu.memory_space<vmem>>, vector<2x32xf32>
    %c88 = arith.constant 88 : index
    %c0_107 = arith.constant 0 : index
    %106 = vector.load %arg14[%c88, %c0_107] : memref<98x32xf32, #tpu.memory_space<vmem>>, vector<2x32xf32>
    tpu.vector_store %arg14[%c88, %c0_107], %105 {strides = array<i32>} : memref<98x32xf32, #tpu.memory_space<vmem>>, vector<2x32xf32>,
    %c0_108 = arith.constant 0 : index
    %c1440 = arith.constant 1440 : index
    %107 = vector.load %arg13[%c0_108, %c1440] : memref<2x1568xf32, #tpu.memory_space<vmem>>, vector<2x32xf32>
    %c90 = arith.constant 90 : index
    %c0_109 = arith.constant 0 : index
    %108 = vector.load %arg14[%c90, %c0_109] : memref<98x32xf32, #tpu.memory_space<vmem>>, vector<2x32xf32>
    tpu.vector_store %arg14[%c90, %c0_109], %107 {strides = array<i32>} : memref<98x32xf32, #tpu.memory_space<vmem>>, vector<2x32xf32>,
    %c0_110 = arith.constant 0 : index
    %c1472 = arith.constant 1472 : index
    %109 = vector.load %arg13[%c0_110, %c1472] : memref<2x1568xf32, #tpu.memory_space<vmem>>, vector<2x32xf32>
    %c92 = arith.constant 92 : index
    %c0_111 = arith.constant 0 : index
    %110 = vector.load %arg14[%c92, %c0_111] : memref<98x32xf32, #tpu.memory_space<vmem>>, vector<2x32xf32>
    tpu.vector_store %arg14[%c92, %c0_111], %109 {strides = array<i32>} : memref<98x32xf32, #tpu.memory_space<vmem>>, vector<2x32xf32>,
    %c0_112 = arith.constant 0 : index
    %c1504 = arith.constant 1504 : index
    %111 = vector.load %arg13[%c0_112, %c1504] : memref<2x1568xf32, #tpu.memory_space<vmem>>, vector<2x32xf32>
    %c94 = arith.constant 94 : index
    %c0_113 = arith.constant 0 : index
    %112 = vector.load %arg14[%c94, %c0_113] : memref<98x32xf32, #tpu.memory_space<vmem>>, vector<2x32xf32>
    tpu.vector_store %arg14[%c94, %c0_113], %111 {strides = array<i32>} : memref<98x32xf32, #tpu.memory_space<vmem>>, vector<2x32xf32>,
    %c0_114 = arith.constant 0 : index
    %c1536 = arith.constant 1536 : index
    %113 = vector.load %arg13[%c0_114, %c1536] : memref<2x1568xf32, #tpu.memory_space<vmem>>, vector<2x32xf32>
    %c96_115 = arith.constant 96 : index
    %c0_116 = arith.constant 0 : index
    %114 = vector.load %arg14[%c96_115, %c0_116] : memref<98x32xf32, #tpu.memory_space<vmem>>, vector<2x32xf32>
    tpu.vector_store %arg14[%c96_115, %c0_116], %113 {strides = array<i32>} : memref<98x32xf32, #tpu.memory_space<vmem>>, vector<2x32xf32>,
    %c0_117 = arith.constant 0 : index
    %c0_118 = arith.constant 0 : index
    %115 = vector.load %arg14[%c0_117, %c0_118] : memref<98x32xf32, #tpu.memory_space<vmem>>, vector<98x32xf32>
    %c0_119 = arith.constant 0 : index
    %c0_120 = arith.constant 0 : index
    %116 = vector.load %arg6[%c0_119, %c0_120] : memref<32x64xf32, #tpu.memory_space<vmem>>, vector<32x64xf32>
    %cst_121 = arith.constant dense<0.000000e+00> : vector<98x64xf32>
    %117 = tpu.matmul %115, %116, %cst_121 {dimension_numbers = #tpu.dot_dimension_numbers<[1], [0], [0], [1], [0, 0, 1, 1], [], []>} : vector<98x32xf32>, vector<32x64xf32>, vector<98x64xf32> -> vector<98x64xf32>
    %c0_122 = arith.constant 0 : index
    %c0_123 = arith.constant 0 : index
    %118 = vector.load %arg7[%c0_122, %c0_123] : memref<1x64xf32, #tpu.memory_space<vmem>>, vector<1x64xf32>
    %119 = vector.broadcast %118 : vector<1x64xf32> to vector<98x64xf32>
    %120 = arith.addf %117, %119 : vector<98x64xf32>
    %cst_124 = arith.constant 0.000000e+00 : f32
    %121 = vector.broadcast %cst_124 : f32 to vector<98x64xf32>
    %122 = arith.maximumf %120, %121 : vector<98x64xf32>
    %c0_125 = arith.constant 0 : index
    %c0_126 = arith.constant 0 : index
    %123 = vector.load %arg8[%c0_125, %c0_126] : memref<64x128xf32, #tpu.memory_space<vmem>>, vector<64x128xf32>
    %cst_127 = arith.constant dense<0.000000e+00> : vector<98x128xf32>
    %124 = tpu.matmul %122, %123, %cst_127 {dimension_numbers = #tpu.dot_dimension_numbers<[1], [0], [0], [1], [0, 0, 1, 1], [], []>} : vector<98x64xf32>, vector<64x128xf32>, vector<98x128xf32> -> vector<98x128xf32>
    %c0_128 = arith.constant 0 : index
    %c0_129 = arith.constant 0 : index
    %125 = vector.load %arg9[%c0_128, %c0_129] : memref<1x128xf32, #tpu.memory_space<vmem>>, vector<1x128xf32>
    %126 = vector.broadcast %125 : vector<1x128xf32> to vector<98x128xf32>
    %127 = arith.addf %124, %126 : vector<98x128xf32>
    %cst_130 = arith.constant 0.000000e+00 : f32
    %128 = vector.broadcast %cst_130 : f32 to vector<98x128xf32>
    %129 = arith.maximumf %127, %128 : vector<98x128xf32>
    %c0_131 = arith.constant 0 : index
    %c0_132 = arith.constant 0 : index
    %130 = vector.load %arg10[%c0_131, %c0_132] : memref<128x192xf32, #tpu.memory_space<vmem>>, vector<128x192xf32>
    %cst_133 = arith.constant dense<0.000000e+00> : vector<98x192xf32>
    %131 = tpu.matmul %129, %130, %cst_133 {dimension_numbers = #tpu.dot_dimension_numbers<[1], [0], [0], [1], [0, 0, 1, 1], [], []>} : vector<98x128xf32>, vector<128x192xf32>, vector<98x192xf32> -> vector<98x192xf32>
    %c0_134 = arith.constant 0 : index
    %c0_135 = arith.constant 0 : index
    %132 = vector.load %arg11[%c0_134, %c0_135] : memref<1x192xf32, #tpu.memory_space<vmem>>, vector<1x192xf32>
    %133 = vector.broadcast %132 : vector<1x192xf32> to vector<98x192xf32>
    %134 = arith.addf %131, %133 : vector<98x192xf32>
    %cst_136 = arith.constant 5.000000e-01 : f32
    %135 = vector.broadcast %cst_136 : f32 to vector<98x192xf32>
    %136 = arith.mulf %135, %134 : vector<98x192xf32>
    %137 = math.tanh %136 : vector<98x192xf32>
    %cst_137 = arith.constant 1.000000e+00 : f32
    %138 = vector.broadcast %cst_137 : f32 to vector<98x192xf32>
    %139 = arith.addf %137, %138 : vector<98x192xf32>
    %cst_138 = arith.constant 5.000000e-01 : f32
    %140 = vector.broadcast %cst_138 : f32 to vector<98x192xf32>
    %141 = arith.mulf %140, %139 : vector<98x192xf32>
    %c0_139 = arith.constant 0 : index
    %c0_140 = arith.constant 0 : index
    %142 = vector.load %arg12[%c0_139, %c0_140] : memref<98x192xf32, #tpu.memory_space<vmem>>, vector<98x192xf32>
    tpu.vector_store %arg12[%c0_139, %c0_140], %141 {strides = array<i32>} : memref<98x192xf32, #tpu.memory_space<vmem>>, vector<98x192xf32>,
    return
  }
  func.func @transform_0(%arg0: i32) -> (i32, i32) {
    %c0_i32 = arith.constant 0 : i32
    %c0_i32_0 = arith.constant 0 : i32
    %c0_i32_1 = arith.constant 0 : i32
    return %c0_i32, %c0_i32_0 : i32, i32
  }
  func.func @transform_1(%arg0: i32) -> (i32, i32) {
    %c0_i32 = arith.constant 0 : i32
    %c0_i32_0 = arith.constant 0 : i32
    %c0_i32_1 = arith.constant 0 : i32
    return %c0_i32, %c0_i32_0 : i32, i32
  }
  func.func @transform_2(%arg0: i32) -> (i32, i32) {
    %c0_i32 = arith.constant 0 : i32
    %c0_i32_0 = arith.constant 0 : i32
    %c0_i32_1 = arith.constant 0 : i32
    return %c0_i32, %c0_i32_0 : i32, i32
  }
  func.func @transform_3(%arg0: i32) -> (i32, i32) {
    %c0_i32 = arith.constant 0 : i32
    %c0_i32_0 = arith.constant 0 : i32
    %c0_i32_1 = arith.constant 0 : i32
    return %c0_i32, %c0_i32_0 : i32, i32
  }
  func.func @transform_4(%arg0: i32) -> (i32, i32) {
    %c0_i32 = arith.constant 0 : i32
    %c0_i32_0 = arith.constant 0 : i32
    %c0_i32_1 = arith.constant 0 : i32
    return %c0_i32, %c0_i32_0 : i32, i32
  }
  func.func @transform_5(%arg0: i32) -> (i32, i32) {
    %c0_i32 = arith.constant 0 : i32
    %c0_i32_0 = arith.constant 0 : i32
    %c0_i32_1 = arith.constant 0 : i32
    return %c0_i32, %c0_i32_0 : i32, i32
  }
  func.func @transform_6(%arg0: i32) -> (i32, i32) {
    %c0_i32 = arith.constant 0 : i32
    %c0_i32_0 = arith.constant 0 : i32
    %c0_i32_1 = arith.constant 0 : i32
    return %c0_i32, %c0_i32_0 : i32, i32
  }
  func.func @transform_7(%arg0: i32) -> (i32, i32) {
    %c0_i32 = arith.constant 0 : i32
    %c0_i32_0 = arith.constant 0 : i32
    %c0_i32_1 = arith.constant 0 : i32
    return %c0_i32, %c0_i32_0 : i32, i32
  }
  func.func @transform_8(%arg0: i32) -> (i32, i32) {
    %c0_i32 = arith.constant 0 : i32
    %c0_i32_0 = arith.constant 0 : i32
    %c0_i32_1 = arith.constant 0 : i32
    return %c0_i32, %c0_i32_0 : i32, i32
  }
  func.func @transform_9(%arg0: i32) -> (i32, i32) {
    %c0_i32 = arith.constant 0 : i32
    %c0_i32_0 = arith.constant 0 : i32
    %c0_i32_1 = arith.constant 0 : i32
    return %c0_i32, %c0_i32_0 : i32, i32
  }
  func.func @transform_10(%arg0: i32) -> (i32, i32) {
    %c0_i32 = arith.constant 0 : i32
    %c0_i32_0 = arith.constant 0 : i32
    %c0_i32_1 = arith.constant 0 : i32
    return %c0_i32, %c0_i32_0 : i32, i32
  }
  func.func @transform_11(%arg0: i32) -> (i32, i32) {
    %c0_i32 = arith.constant 0 : i32
    %c0_i32_0 = arith.constant 0 : i32
    %c0_i32_1 = arith.constant 0 : i32
    return %c0_i32, %c0_i32_0 : i32, i32
  }
}

</mosaic_0001>

<llo_original>
// kernel: decoder_forward.1
$region0: #{decoder_forward.1}
  #allocation0 [shape = 'u32[]', space=smem, size = 0x4, offset = 0x4, fixed_abs, tag = 'smem constant byte address 0x4 - core index']
  #allocation1 [shape = 'u32[72,128]{1,0:T(1,128)}', space=vmem, size = 0x9000, scoped, tag = 'internal scratch']
  #allocation2 [shape = 'f32[2,1568]{1,0:T(2,128)}', space=vmem, size = 0x3400, scoped, tag = 'scratch operand']
  #allocation3 [shape = 'f32[98,32]{1,0:T(8,128)}', space=vmem, size = 0xd000, scoped, tag = 'scratch operand']
  %s0 = inlined_call_operand.hbm [shape: f32[2,4], index: 0, kind: input, shape index: {}]
  %s1 = inlined_call_operand.hbm [shape: f32[4,128], index: 1, kind: input, shape index: {}]
  %s2 = inlined_call_operand.hbm [shape: f32[1,128], index: 2, kind: input, shape index: {}]
  %s3 = inlined_call_operand.vmem [shape: bf16[128,1568], index: 3, kind: input, shape index: {}]
  %s4 = inlined_call_operand.hbm [shape: f32[1,1568], index: 4, kind: input, shape index: {}]
  %s5 = inlined_call_operand.hbm [shape: f32[32,64], index: 5, kind: input, shape index: {}]
  %s6 = inlined_call_operand.hbm [shape: f32[1,64], index: 6, kind: input, shape index: {}]
  %s7 = inlined_call_operand.hbm [shape: f32[64,128], index: 7, kind: input, shape index: {}]
  %s8 = inlined_call_operand.hbm [shape: f32[1,128], index: 8, kind: input, shape index: {}]
  %s9 = inlined_call_operand.vmem [shape: f32[128,192], index: 9, kind: input, shape index: {}]
  %s10 = inlined_call_operand.hbm [shape: f32[1,192], index: 10, kind: input, shape index: {}]
  %s11 = inlined_call_operand.vmem [shape: f32[98,192], index: 11, kind: output, shape index: {}]
  %s12 = sld [smem:[#allocation0]]
  $region90: #{decoder_forward.1} parent=0
    _
  %s14 = ssub.s32 1, %s12
  %s15 = scalar_select 0, %s14, %s12
  $region1: #{decoder_forward.1} parent=0
    #allocation4 [shape = 'u8[1024]{0}', space=vmem, size = 0x400, scoped, tag = 'input window, operand 0, single buffered']
    #allocation5 [shape = 's32[1]{0}', space=sflag, size = 0x4, scoped, tag = 'scoped memory for decoder_forward.1']
    #allocation6 [shape = 'u8[2048]{0}', space=vmem, size = 0x800, scoped, tag = 'input window, operand 1, single buffered']
    #allocation7 [shape = 's32[1]{0}', space=sflag, size = 0x4, scoped, tag = 'scoped memory for decoder_forward.1']
    #allocation8 [shape = 'u8[512]{0}', space=vmem, size = 0x400, scoped, tag = 'input window, operand 2, single buffered']
    #allocation9 [shape = 'u8[6656]{0}', space=vmem, size = 0x1c00, scoped, tag = 'input window, operand 4, single buffered']
    #allocation10 [shape = 's32[1]{0}', space=sflag, size = 0x4, scoped, tag = 'scoped memory for decoder_forward.1']
    #allocation11 [shape = 'u8[16384]{0}', space=vmem, size = 0x4000, scoped, tag = 'input window, operand 5, single buffered']
    #allocation12 [shape = 'u8[512]{0}', space=vmem, size = 0x400, scoped, tag = 'input window, operand 6, single buffered']
    #allocation13 [shape = 's32[1]{0}', space=sflag, size = 0x4, scoped, tag = 'scoped memory for decoder_forward.1']
    #allocation14 [shape = 'u8[32768]{0}', space=vmem, size = 0x8000, scoped, tag = 'input window, operand 7, single buffered']
    #allocation15 [shape = 'u8[512]{0}', space=vmem, size = 0x400, scoped, tag = 'input window, operand 8, single buffered']
    #allocation16 [shape = 's32[1]{0}', space=sflag, size = 0x4, scoped, tag = 'scoped memory for decoder_forward.1']
    #allocation17 [shape = 'u8[1024]{0}', space=vmem, size = 0x400, scoped, tag = 'input window, operand 10, single buffered']
    %16 = vsyncpa [#allocation5], 0
    %17 = vsyncpa [#allocation7], 0
    %18 = vsyncpa [#allocation10], 0
    %19 = vsyncpa [#allocation13], 0
    %20 = vsyncpa [#allocation16], 0
    // Predicated region
    $region2: #{decoder_forward.1} parent=1 // pred_check
      _
    $region3: #{decoder_forward.1} parent=1 // pred_check_branch
      %22 = sbr.rel (0) target = $region5
    $region4: #{decoder_forward.1} parent=1 // pred_region
      %24 = vsyncadd [#allocation5], 0
      %s26 = sshll.u32 %s0, 4
      %s27 = int_to_ptr.hbm [resolvable:$true] %s26
      %s28 = sshll.u32 [#allocation4], 4
      %s29 = int_to_ptr.vmem [resolvable:$true] %s28
      %31 = dma.hbm_to_vmem [thread:$0]  %s27, 32, %s29, [#allocation5]
    $region5: #{decoder_forward.1} parent=1 // pred_fallthru
      _
    // Predicated region
    $region6: #{decoder_forward.1} parent=1 // pred_check
      _
    $region7: #{decoder_forward.1} parent=1 // pred_check_branch
      %33 = sbr.rel (0) target = $region9
    $region8: #{decoder_forward.1} parent=1 // pred_region
      %35 = vsyncadd [#allocation7], 0
      %s37 = sshll.u32 %s1, 4
      %s38 = int_to_ptr.hbm [resolvable:$true] %s37
      %s39 = sshll.u32 [#allocation6], 4
      %s40 = int_to_ptr.vmem [resolvable:$true] %s39
      %42 = dma.hbm_to_vmem [thread:$0]  %s38, 64, %s40, [#allocation7]
    $region9: #{decoder_forward.1} parent=1 // pred_fallthru
      _
    // Predicated region
    $region10: #{decoder_forward.1} parent=1 // pred_check
      _
    $region11: #{decoder_forward.1} parent=1 // pred_check_branch
      %44 = sbr.rel (0) target = $region13
    $region12: #{decoder_forward.1} parent=1 // pred_region
      %46 = vsyncadd [#allocation7], 0
      %s48 = sshll.u32 %s2, 4
      %s49 = int_to_ptr.hbm [resolvable:$true] %s48
      %s50 = sshll.u32 [#allocation8], 4
      %s51 = int_to_ptr.vmem [resolvable:$true] %s50
      %53 = dma.hbm_to_vmem [thread:$0]  %s49, 16, %s51, [#allocation7]
    $region13: #{decoder_forward.1} parent=1 // pred_fallthru
      _
    // Predicated region
    $region14: #{decoder_forward.1} parent=1 // pred_check
      _
    $region15: #{decoder_forward.1} parent=1 // pred_check_branch
      %55 = sbr.rel (0) target = $region17
    $region16: #{decoder_forward.1} parent=1 // pred_region
      _
    $region17: #{decoder_forward.1} parent=1 // pred_fallthru
      _
    // Predicated region
    $region18: #{decoder_forward.1} parent=1 // pred_check
      _
    $region19: #{decoder_forward.1} parent=1 // pred_check_branch
      %57 = sbr.rel (0) target = $region21
    $region20: #{decoder_forward.1} parent=1 // pred_region
      %59 = vsyncadd [#allocation10], 0
      %s61 = sshll.u32 %s4, 4
      %s62 = int_to_ptr.hbm [resolvable:$true] %s61
      %s63 = sshll.u32 [#allocation9], 4
      %s64 = int_to_ptr.vmem [resolvable:$true] %s63
      %66 = dma.hbm_to_vmem [thread:$0]  %s62, 208, %s64, [#allocation10]
    $region21: #{decoder_forward.1} parent=1 // pred_fallthru
      _
    // Predicated region
    $region22: #{decoder_forward.1} parent=1 // pred_check
      _
    $region23: #{decoder_forward.1} parent=1 // pred_check_branch
      %68 = sbr.rel (0) target = $region25
    $region24: #{decoder_forward.1} parent=1 // pred_region
      %70 = vsyncadd [#allocation10], 0
      %s71 = sshll.u32 %s5, 4
      %s72 = int_to_ptr.hbm [resolvable:$true] %s71
      %s73 = sshll.u32 [#allocation11], 4
      %s74 = int_to_ptr.vmem [resolvable:$true] %s73
      %79 = dma.hbm_to_vmem [thread:$0]  %s72, 512, %s74, [#allocation10], 128, 128, 8
    $region25: #{decoder_forward.1} parent=1 // pred_fallthru
      _
    // Predicated region
    $region26: #{decoder_forward.1} parent=1 // pred_check
      _
    $region27: #{decoder_forward.1} parent=1 // pred_check_branch
      %81 = sbr.rel (0) target = $region29
    $region28: #{decoder_forward.1} parent=1 // pred_region
      %83 = vsyncadd [#allocation13], 0
      %s85 = sshll.u32 %s6, 4
      %s86 = int_to_ptr.hbm [resolvable:$true] %s85
      %s87 = sshll.u32 [#allocation12], 4
      %s88 = int_to_ptr.vmem [resolvable:$true] %s87
      %90 = dma.hbm_to_vmem [thread:$0]  %s86, 16, %s88, [#allocation13]
    $region29: #{decoder_forward.1} parent=1 // pred_fallthru
      _
    // Predicated region
    $region30: #{decoder_forward.1} parent=1 // pred_check
      _
    $region31: #{decoder_forward.1} parent=1 // pred_check_branch
      %92 = sbr.rel (0) target = $region33
    $region32: #{decoder_forward.1} parent=1 // pred_region
      %94 = vsyncadd [#allocation13], 0
      %s95 = sshll.u32 %s7, 4
      %s96 = int_to_ptr.hbm [resolvable:$true] %s95
      %s97 = sshll.u32 [#allocation14], 4
      %s98 = int_to_ptr.vmem [resolvable:$true] %s97
      %103 = dma.hbm_to_vmem [thread:$0]  %s96, 1024, %s98, [#allocation13], 128, 128, 8
    $region33: #{decoder_forward.1} parent=1 // pred_fallthru
      _
    // Predicated region
    $region34: #{decoder_forward.1} parent=1 // pred_check
      _
    $region35: #{decoder_forward.1} parent=1 // pred_check_branch
      %105 = sbr.rel (0) target = $region37
    $region36: #{decoder_forward.1} parent=1 // pred_region
      %107 = vsyncadd [#allocation16], 0
      %s109 = sshll.u32 %s8, 4
      %s110 = int_to_ptr.hbm [resolvable:$true] %s109
      %s111 = sshll.u32 [#allocation15], 4
      %s112 = int_to_ptr.vmem [resolvable:$true] %s111
      %114 = dma.hbm_to_vmem [thread:$0]  %s110, 16, %s112, [#allocation16]
    $region37: #{decoder_forward.1} parent=1 // pred_fallthru
      _
    // Predicated region
    $region38: #{decoder_forward.1} parent=1 // pred_check
      _
    $region39: #{decoder_forward.1} parent=1 // pred_check_branch
      %116 = sbr.rel (0) target = $region41
    $region40: #{decoder_forward.1} parent=1 // pred_region
      _
    $region41: #{decoder_forward.1} parent=1 // pred_fallthru
      _
    // Predicated region
    $region42: #{decoder_forward.1} parent=1 // pred_check
      _
    $region43: #{decoder_forward.1} parent=1 // pred_check_branch
      %118 = sbr.rel (0) target = $region45
    $region44: #{decoder_forward.1} parent=1 // pred_region
      %120 = vsyncadd [#allocation16], 0
      %s122 = sshll.u32 %s10, 4
      %s123 = int_to_ptr.hbm [resolvable:$true] %s122
      %s124 = sshll.u32 [#allocation17], 4
      %s125 = int_to_ptr.vmem [resolvable:$true] %s124
      %127 = dma.hbm_to_vmem [thread:$0]  %s123, 32, %s125, [#allocation16]
    $region45: #{decoder_forward.1} parent=1 // pred_fallthru
      _
    // Predicated region
    $region46: #{decoder_forward.1} parent=1 // pred_check
      _
    $region47: #{decoder_forward.1} parent=1 // pred_check_branch
      %129 = sbr.rel (0) target = $region49
    $region48: #{decoder_forward.1} parent=1 // pred_region
      %131 = dma.done [#allocation5], 32
    $region49: #{decoder_forward.1} parent=1 // pred_fallthru
      _
    // Predicated region
    $region50: #{decoder_forward.1} parent=1 // pred_check
      _
    $region51: #{decoder_forward.1} parent=1 // pred_check_branch
      %133 = sbr.rel (0) target = $region53
    $region52: #{decoder_forward.1} parent=1 // pred_region
      %135 = dma.done [#allocation7], 64
    $region53: #{decoder_forward.1} parent=1 // pred_fallthru
      _
    // Predicated region
    $region54: #{decoder_forward.1} parent=1 // pred_check
      _
    $region55: #{decoder_forward.1} parent=1 // pred_check_branch
      %137 = sbr.rel (0) target = $region57
    $region56: #{decoder_forward.1} parent=1 // pred_region
      %139 = dma.done [#allocation7], 16
    $region57: #{decoder_forward.1} parent=1 // pred_fallthru
      _
    // Predicated region
    $region58: #{decoder_forward.1} parent=1 // pred_check
      _
    $region59: #{decoder_forward.1} parent=1 // pred_check_branch
      %141 = sbr.rel (0) target = $region61
    $region60: #{decoder_forward.1} parent=1 // pred_region
      %143 = dma.done [#allocation10], 208
    $region61: #{decoder_forward.1} parent=1 // pred_fallthru
      _
    // Predicated region
    $region62: #{decoder_forward.1} parent=1 // pred_check
      _
    $region63: #{decoder_forward.1} parent=1 // pred_check_branch
      %145 = sbr.rel (0) target = $region65
    $region64: #{decoder_forward.1} parent=1 // pred_region
      %147 = dma.done [#allocation10], 512
    $region65: #{decoder_forward.1} parent=1 // pred_fallthru
      _
    // Predicated region
    $region66: #{decoder_forward.1} parent=1 // pred_check
      _
    $region67: #{decoder_forward.1} parent=1 // pred_check_branch
      %149 = sbr.rel (0) target = $region69
    $region68: #{decoder_forward.1} parent=1 // pred_region
      %151 = dma.done [#allocation13], 16
    $region69: #{decoder_forward.1} parent=1 // pred_fallthru
      _
    // Predicated region
    $region70: #{decoder_forward.1} parent=1 // pred_check
      _
    $region71: #{decoder_forward.1} parent=1 // pred_check_branch
      %153 = sbr.rel (0) target = $region73
    $region72: #{decoder_forward.1} parent=1 // pred_region
      %155 = dma.done [#allocation13], 1024
    $region73: #{decoder_forward.1} parent=1 // pred_fallthru
      _
    // Predicated region
    $region74: #{decoder_forward.1} parent=1 // pred_check
      _
    $region75: #{decoder_forward.1} parent=1 // pred_check_branch
      %157 = sbr.rel (0) target = $region77
    $region76: #{decoder_forward.1} parent=1 // pred_region
      %159 = dma.done [#allocation16], 16
    $region77: #{decoder_forward.1} parent=1 // pred_fallthru
      _
    // Predicated region
    $region78: #{decoder_forward.1} parent=1 // pred_check
      _
    $region79: #{decoder_forward.1} parent=1 // pred_check_branch
      %161 = sbr.rel (0) target = $region81
    $region80: #{decoder_forward.1} parent=1 // pred_region
      %163 = dma.done [#allocation16], 32
    $region81: #{decoder_forward.1} parent=1 // pred_fallthru
      _
    %v164 = vld [vmem:[#allocation4] sm:$0x3]
    %v165 = vld [vmem:[#allocation6] sm:$0xf]
    %v166 = vld [vmem:[#allocation8] sm:$0x1]
    %v168 = vperm.slane %v166, 0
    %vm170 = vcmask 31744
    %v172 = vsel %vm170, %v164, 0
    %vm174 = vcmask 1043456
    %v176 = vsel %vm174, %v165, 0
    %178 = vmatpush.msra.mxu0 0.0
    %179 = vmatpush.msra.mxu0 0.0
    %180 = vmatpush.msra.mxu0 0.0
    %181 = vmatpush.msra.mxu0 0.0
    %182 = vmatpush.msra.mxu0 0.0
    %183 = vmatpush.msra.mxu0 0.0
    %184 = vmatpush.msra.mxu0 0.0
    %185 = vmatpush.msra.mxu0 0.0
    %186 = vmatpush.msra.mxu0 0.0
    %187 = vmatpush.msra.mxu0 0.0
    %188 = vmatpush.msra.mxu0 0.0
    %189 = vmatpush.msra.mxu0 0.0
    %190 = vmatpush.msra.mxu0 0.0
    %191 = vmatpush.msra.mxu0 0.0
    %192 = vmatpush.msra.mxu0 0.0
    %193 = vmatpush.msra.mxu0 %v176
    %194 = vmatmul.f32.gmra.mxu0 %v172
    %v195 = vpop.f32.mrf.mxu0
    %v196 = vadd.f32 %v168, %v195
    %197 = vdwg.mxu0
    %v198 = vmax.f32 %v196, 0.0
    %v199 = vpack.c.bf16 %v198, %v198
    %v200 = vld [vmem:[%s3] sm:$0xff]
    %v201 = vld [vmem:[%s3 + $0x8] sm:$0xff]
    %v202 = vld [vmem:[%s3 + $0x10] sm:$0xff]
    %v203 = vld [vmem:[%s3 + $0x18] sm:$0xff]
    %v204 = vld [vmem:[%s3 + $0x20] sm:$0xff]
    %v205 = vld [vmem:[%s3 + $0x28] sm:$0xff]
    %v206 = vld [vmem:[%s3 + $0x30] sm:$0xf]
    %v207 = vld [vmem:[%s3 + $0x34] sm:$0xff]
    %v208 = vld [vmem:[%s3 + $0x3c] sm:$0xff]
    %v209 = vld [vmem:[%s3 + $0x44] sm:$0xff]
    %v210 = vld [vmem:[%s3 + $0x4c] sm:$0xff]
    %v211 = vld [vmem:[%s3 + $0x54] sm:$0xff]
    %v212 = vld [vmem:[%s3 + $0x5c] sm:$0xff]
    %v213 = vld [vmem:[%s3 + $0x64] sm:$0xf]
    %v214 = vld [vmem:[%s3 + $0x68] sm:$0xff]
    %v215 = vld [vmem:[%s3 + $0x70] sm:$0xff]
    %v216 = vld [vmem:[%s3 + $0x78] sm:$0xff]
    %v217 = vld [vmem:[%s3 + $0x80] sm:$0xff]
    %v218 = vld [vmem:[%s3 + $0x88] sm:$0xff]
    %v219 = vld [vmem:[%s3 + $0x90] sm:$0xff]
    %v220 = vld [vmem:[%s3 + $0x98] sm:$0xf]
    %v221 = vld [vmem:[%s3 + $0x9c] sm:$0xff]
    %v222 = vld [vmem:[%s3 + $0xa4] sm:$0xff]
    %v223 = vld [vmem:[%s3 + $0xac] sm:$0xff]
    %v224 = vld [vmem:[%s3 + $0xb4] sm:$0xff]
    %v225 = vld [vmem:[%s3 + $0xbc] sm:$0xff]
    %v226 = vld [vmem:[%s3 + $0xc4] sm:$0xff]
    %v227 = vld [vmem:[%s3 + $0xcc] sm:$0xf]
    %v228 = vld [vmem:[%s3 + $0xd0] sm:$0xff]
    %v229 = vld [vmem:[%s3 + $0xd8] sm:$0xff]
    %v230 = vld [vmem:[%s3 + $0xe0] sm:$0xff]
    %v231 = vld [vmem:[%s3 + $0xe8] sm:$0xff]
    %v232 = vld [vmem:[%s3 + $0xf0] sm:$0xff]
    %v233 = vld [vmem:[%s3 + $0xf8] sm:$0xff]
    %v234 = vld [vmem:[%s3 + $0x100] sm:$0xf]
    %v235 = vld [vmem:[%s3 + $0x104] sm:$0xff]
    %v236 = vld [vmem:[%s3 + $0x10c] sm:$0xff]
    %v237 = vld [vmem:[%s3 + $0x114] sm:$0xff]
    %v238 = vld [vmem:[%s3 + $0x11c] sm:$0xff]
    %v239 = vld [vmem:[%s3 + $0x124] sm:$0xff]
    %v240 = vld [vmem:[%s3 + $0x12c] sm:$0xff]
    %v241 = vld [vmem:[%s3 + $0x134] sm:$0xf]
    %v242 = vld [vmem:[%s3 + $0x138] sm:$0xff]
    %v243 = vld [vmem:[%s3 + $0x140] sm:$0xff]
    %v244 = vld [vmem:[%s3 + $0x148] sm:$0xff]
    %v245 = vld [vmem:[%s3 + $0x150] sm:$0xff]
    %v246 = vld [vmem:[%s3 + $0x158] sm:$0xff]
    %v247 = vld [vmem:[%s3 + $0x160] sm:$0xff]
    %v248 = vld [vmem:[%s3 + $0x168] sm:$0xf]
    %v249 = vld [vmem:[%s3 + $0x16c] sm:$0xff]
    %v250 = vld [vmem:[%s3 + $0x174] sm:$0xff]
    %v251 = vld [vmem:[%s3 + $0x17c] sm:$0xff]
    %v252 = vld [vmem:[%s3 + $0x184] sm:$0xff]
    %v253 = vld [vmem:[%s3 + $0x18c] sm:$0xff]
    %v254 = vld [vmem:[%s3 + $0x194] sm:$0xff]
    %v255 = vld [vmem:[%s3 + $0x19c] sm:$0xf]
    %v256 = vld [vmem:[%s3 + $0x1a0] sm:$0xff]
    %v257 = vld [vmem:[%s3 + $0x1a8] sm:$0xff]
    %v258 = vld [vmem:[%s3 + $0x1b0] sm:$0xff]
    %v259 = vld [vmem:[%s3 + $0x1b8] sm:$0xff]
    %v260 = vld [vmem:[%s3 + $0x1c0] sm:$0xff]
    %v261 = vld [vmem:[%s3 + $0x1c8] sm:$0xff]
    %v262 = vld [vmem:[%s3 + $0x1d0] sm:$0xf]
    %v263 = vld [vmem:[%s3 + $0x1d4] sm:$0xff]
    %v264 = vld [vmem:[%s3 + $0x1dc] sm:$0xff]
    %v265 = vld [vmem:[%s3 + $0x1e4] sm:$0xff]
    %v266 = vld [vmem:[%s3 + $0x1ec] sm:$0xff]
    %v267 = vld [vmem:[%s3 + $0x1f4] sm:$0xff]
    %v268 = vld [vmem:[%s3 + $0x1fc] sm:$0xff]
    %v269 = vld [vmem:[%s3 + $0x204] sm:$0xf]
    %v270 = vld [vmem:[%s3 + $0x208] sm:$0xff]
    %v271 = vld [vmem:[%s3 + $0x210] sm:$0xff]
    %v272 = vld [vmem:[%s3 + $0x218] sm:$0xff]
    %v273 = vld [vmem:[%s3 + $0x220] sm:$0xff]
    %v274 = vld [vmem:[%s3 + $0x228] sm:$0xff]
    %v275 = vld [vmem:[%s3 + $0x230] sm:$0xff]
    %v276 = vld [vmem:[%s3 + $0x238] sm:$0xf]
    %v277 = vld [vmem:[%s3 + $0x23c] sm:$0xff]
    %v278 = vld [vmem:[%s3 + $0x244] sm:$0xff]
    %v279 = vld [vmem:[%s3 + $0x24c] sm:$0xff]
    %v280 = vld [vmem:[%s3 + $0x254] sm:$0xff]
    %v281 = vld [vmem:[%s3 + $0x25c] sm:$0xff]
    %v282 = vld [vmem:[%s3 + $0x264] sm:$0xff]
    %v283 = vld [vmem:[%s3 + $0x26c] sm:$0xf]
    %v284 = vld [vmem:[%s3 + $0x270] sm:$0xff]
    %v285 = vld [vmem:[%s3 + $0x278] sm:$0xff]
    %v286 = vld [vmem:[%s3 + $0x280] sm:$0xff]
    %v287 = vld [vmem:[%s3 + $0x288] sm:$0xff]
    %v288 = vld [vmem:[%s3 + $0x290] sm:$0xff]
    %v289 = vld [vmem:[%s3 + $0x298] sm:$0xff]
    %v290 = vld [vmem:[%s3 + $0x2a0] sm:$0xf]
    %v291 = vld [vmem:[%s3 + $0x2a4] sm:$0xff]
    %v292 = vld [vmem:[%s3 + $0x2ac] sm:$0xff]
    %v293 = vld [vmem:[%s3 + $0x2b4] sm:$0xff]
    %v294 = vld [vmem:[%s3 + $0x2bc] sm:$0xff]
    %v295 = vld [vmem:[%s3 + $0x2c4] sm:$0xff]
    %v296 = vld [vmem:[%s3 + $0x2cc] sm:$0xff]
    %v297 = vld [vmem:[%s3 + $0x2d4] sm:$0xf]
    %v298 = vld [vmem:[%s3 + $0x2d8] sm:$0xff]
    %v299 = vld [vmem:[%s3 + $0x2e0] sm:$0xff]
    %v300 = vld [vmem:[%s3 + $0x2e8] sm:$0xff]
    %v301 = vld [vmem:[%s3 + $0x2f0] sm:$0xff]
    %v302 = vld [vmem:[%s3 + $0x2f8] sm:$0xff]
    %v303 = vld [vmem:[%s3 + $0x300] sm:$0xff]
    %v304 = vld [vmem:[%s3 + $0x308] sm:$0xf]
    %v305 = vld [vmem:[%s3 + $0x30c] sm:$0xff]
    %v306 = vld [vmem:[%s3 + $0x314] sm:$0xff]
    %v307 = vld [vmem:[%s3 + $0x31c] sm:$0xff]
    %v308 = vld [vmem:[%s3 + $0x324] sm:$0xff]
    %v309 = vld [vmem:[%s3 + $0x32c] sm:$0xff]
    %v310 = vld [vmem:[%s3 + $0x334] sm:$0xff]
    %v311 = vld [vmem:[%s3 + $0x33c] sm:$0xf]
    %v312 = vld [vmem:[#allocation9] sm:$0xff]
    %v313 = vld [vmem:[#allocation9 + $0x8] sm:$0x1f]
    %v316 = vperm.slane %v312, 0
    %v317 = vperm.slane %v312, 1
    %v318 = vperm.slane %v312, 2
    %v319 = vperm.slane %v312, 3
    %v320 = vperm.slane %v312, 4
    %v321 = vperm.slane %v312, 5
    %v322 = vperm.slane %v312, 6
    %v323 = vperm.slane %v312, 7
    %v324 = vperm.slane %v313, 0
    %v325 = vperm.slane %v313, 1
    %v326 = vperm.slane %v313, 2
    %v327 = vperm.slane %v313, 3
    %v328 = vperm.slane %v313, 4
    %v454 = vunpack.c.l.b16 %v200
    %v455 = vunpack.c.h.b16 %v200
    %v456 = vunpack.c.l.b16 %v201
    %v457 = vunpack.c.h.b16 %v201
    %v458 = vunpack.c.l.b16 %v202
    %v459 = vunpack.c.h.b16 %v202
    %v460 = vunpack.c.l.b16 %v203
    %v461 = vunpack.c.h.b16 %v203
    %v462 = vunpack.c.l.b16 %v204
    %v463 = vunpack.c.h.b16 %v204
    %v464 = vunpack.c.l.b16 %v205
    %v465 = vunpack.c.h.b16 %v205
    %v466 = vunpack.c.l.b16 %v206
    %v467 = vunpack.c.l.b16 %v207
    %v468 = vunpack.c.h.b16 %v207
    %v469 = vunpack.c.l.b16 %v208
    %v470 = vunpack.c.h.b16 %v208
    %v471 = vunpack.c.l.b16 %v209
    %v472 = vunpack.c.h.b16 %v209
    %v473 = vunpack.c.l.b16 %v210
    %v474 = vunpack.c.h.b16 %v210
    %v475 = vunpack.c.l.b16 %v211
    %v476 = vunpack.c.h.b16 %v211
    %v477 = vunpack.c.l.b16 %v212
    %v478 = vunpack.c.h.b16 %v212
    %v479 = vunpack.c.l.b16 %v213
    %v480 = vunpack.c.l.b16 %v214
    %v481 = vunpack.c.h.b16 %v214
    %v482 = vunpack.c.l.b16 %v215
    %v483 = vunpack.c.h.b16 %v215
    %v484 = vunpack.c.l.b16 %v216
    %v485 = vunpack.c.h.b16 %v216
    %v486 = vunpack.c.l.b16 %v217
    %v487 = vunpack.c.h.b16 %v217
    %v488 = vunpack.c.l.b16 %v218
    %v489 = vunpack.c.h.b16 %v218
    %v490 = vunpack.c.l.b16 %v219
    %v491 = vunpack.c.h.b16 %v219
    %v492 = vunpack.c.l.b16 %v220
    %v493 = vunpack.c.l.b16 %v221
    %v494 = vunpack.c.h.b16 %v221
    %v495 = vunpack.c.l.b16 %v222
    %v496 = vunpack.c.h.b16 %v222
    %v497 = vunpack.c.l.b16 %v223
    %v498 = vunpack.c.h.b16 %v223
    %v499 = vunpack.c.l.b16 %v224
    %v500 = vunpack.c.h.b16 %v224
    %v501 = vunpack.c.l.b16 %v225
    %v502 = vunpack.c.h.b16 %v225
    %v503 = vunpack.c.l.b16 %v226
    %v504 = vunpack.c.h.b16 %v226
    %v505 = vunpack.c.l.b16 %v227
    %v506 = vunpack.c.l.b16 %v228
    %v507 = vunpack.c.h.b16 %v228
    %v508 = vunpack.c.l.b16 %v229
    %v509 = vunpack.c.h.b16 %v229
    %v510 = vunpack.c.l.b16 %v230
    %v511 = vunpack.c.h.b16 %v230
    %v512 = vunpack.c.l.b16 %v231
    %v513 = vunpack.c.h.b16 %v231
    %v514 = vunpack.c.l.b16 %v232
    %v515 = vunpack.c.h.b16 %v232
    %v516 = vunpack.c.l.b16 %v233
    %v517 = vunpack.c.h.b16 %v233
    %v518 = vunpack.c.l.b16 %v234
    %v519 = vunpack.c.l.b16 %v235
    %v520 = vunpack.c.h.b16 %v235
    %v521 = vunpack.c.l.b16 %v236
    %v522 = vunpack.c.h.b16 %v236
    %v523 = vunpack.c.l.b16 %v237
    %v524 = vunpack.c.h.b16 %v237
    %v525 = vunpack.c.l.b16 %v238
    %v526 = vunpack.c.h.b16 %v238
    %v527 = vunpack.c.l.b16 %v239
    %v528 = vunpack.c.h.b16 %v239
    %v529 = vunpack.c.l.b16 %v240
    %v530 = vunpack.c.h.b16 %v240
    %v531 = vunpack.c.l.b16 %v241
    %v532 = vunpack.c.l.b16 %v242
    %v533 = vunpack.c.h.b16 %v242
    %v534 = vunpack.c.l.b16 %v243
    %v535 = vunpack.c.h.b16 %v243
    %v536 = vunpack.c.l.b16 %v244
    %v537 = vunpack.c.h.b16 %v244
    %v538 = vunpack.c.l.b16 %v245
    %v539 = vunpack.c.h.b16 %v245
    %v540 = vunpack.c.l.b16 %v246
    %v541 = vunpack.c.h.b16 %v246
    %v542 = vunpack.c.l.b16 %v247
    %v543 = vunpack.c.h.b16 %v247
    %v544 = vunpack.c.l.b16 %v248
    %v545 = vunpack.c.l.b16 %v249
    %v546 = vunpack.c.h.b16 %v249
    %v547 = vunpack.c.l.b16 %v250
    %v548 = vunpack.c.h.b16 %v250
    %v549 = vunpack.c.l.b16 %v251
    %v550 = vunpack.c.h.b16 %v251
    %v551 = vunpack.c.l.b16 %v252
    %v552 = vunpack.c.h.b16 %v252
    %v553 = vunpack.c.l.b16 %v253
    %v554 = vunpack.c.h.b16 %v253
    %v555 = vunpack.c.l.b16 %v254
    %v556 = vunpack.c.h.b16 %v254
    %v557 = vunpack.c.l.b16 %v255
    %v558 = vunpack.c.l.b16 %v256
    %v559 = vunpack.c.h.b16 %v256
    %v560 = vunpack.c.l.b16 %v257
    %v561 = vunpack.c.h.b16 %v257
    %v562 = vunpack.c.l.b16 %v258
    %v563 = vunpack.c.h.b16 %v258
    %v564 = vunpack.c.l.b16 %v259
    %v565 = vunpack.c.h.b16 %v259
    %v566 = vunpack.c.l.b16 %v260
    %v567 = vunpack.c.h.b16 %v260
    %v568 = vunpack.c.l.b16 %v261
    %v569 = vunpack.c.h.b16 %v261
    %v570 = vunpack.c.l.b16 %v262
    %v571 = vunpack.c.l.b16 %v263
    %v572 = vunpack.c.h.b16 %v263
    %v573 = vunpack.c.l.b16 %v264
    %v574 = vunpack.c.h.b16 %v264
    %v575 = vunpack.c.l.b16 %v265
    %v576 = vunpack.c.h.b16 %v265
    %v577 = vunpack.c.l.b16 %v266
    %v578 = vunpack.c.h.b16 %v266
    %v579 = vunpack.c.l.b16 %v267
    %v580 = vunpack.c.h.b16 %v267
    %v581 = vunpack.c.l.b16 %v268
    %v582 = vunpack.c.h.b16 %v268
    %v583 = vunpack.c.l.b16 %v269
    %v584 = vunpack.c.l.b16 %v270
    %v585 = vunpack.c.h.b16 %v270
    %v586 = vunpack.c.l.b16 %v271
    %v587 = vunpack.c.h.b16 %v271
    %v588 = vunpack.c.l.b16 %v272
    %v589 = vunpack.c.h.b16 %v272
    %v590 = vunpack.c.l.b16 %v273
    %v591 = vunpack.c.h.b16 %v273
    %v592 = vunpack.c.l.b16 %v274
    %v593 = vunpack.c.h.b16 %v274
    %v594 = vunpack.c.l.b16 %v275
    %v595 = vunpack.c.h.b16 %v275
    %v596 = vunpack.c.l.b16 %v276
    %v597 = vunpack.c.l.b16 %v277
    %v598 = vunpack.c.h.b16 %v277
    %v599 = vunpack.c.l.b16 %v278
    %v600 = vunpack.c.h.b16 %v278
    %v601 = vunpack.c.l.b16 %v279
    %v602 = vunpack.c.h.b16 %v279
    %v603 = vunpack.c.l.b16 %v280
    %v604 = vunpack.c.h.b16 %v280
    %v605 = vunpack.c.l.b16 %v281
    %v606 = vunpack.c.h.b16 %v281
    %v607 = vunpack.c.l.b16 %v282
    %v608 = vunpack.c.h.b16 %v282
    %v609 = vunpack.c.l.b16 %v283
    %v610 = vunpack.c.l.b16 %v284
    %v611 = vunpack.c.h.b16 %v284
    %v612 = vunpack.c.l.b16 %v285
    %v613 = vunpack.c.h.b16 %v285
    %v614 = vunpack.c.l.b16 %v286
    %v615 = vunpack.c.h.b16 %v286
    %v616 = vunpack.c.l.b16 %v287
    %v617 = vunpack.c.h.b16 %v287
    %v618 = vunpack.c.l.b16 %v288
    %v619 = vunpack.c.h.b16 %v288
    %v620 = vunpack.c.l.b16 %v289
    %v621 = vunpack.c.h.b16 %v289
    %v622 = vunpack.c.l.b16 %v290
    %v623 = vunpack.c.l.b16 %v291
    %v624 = vunpack.c.h.b16 %v291
    %v625 = vunpack.c.l.b16 %v292
    %v626 = vunpack.c.h.b16 %v292
    %v627 = vunpack.c.l.b16 %v293
    %v628 = vunpack.c.h.b16 %v293
    %v629 = vunpack.c.l.b16 %v294
    %v630 = vunpack.c.h.b16 %v294
    %v631 = vunpack.c.l.b16 %v295
    %v632 = vunpack.c.h.b16 %v295
    %v633 = vunpack.c.l.b16 %v296
    %v634 = vunpack.c.h.b16 %v296
    %v635 = vunpack.c.l.b16 %v297
    %v636 = vunpack.c.l.b16 %v298
    %v637 = vunpack.c.h.b16 %v298
    %v638 = vunpack.c.l.b16 %v299
    %v639 = vunpack.c.h.b16 %v299
    %v640 = vunpack.c.l.b16 %v300
    %v641 = vunpack.c.h.b16 %v300
    %v642 = vunpack.c.l.b16 %v301
    %v643 = vunpack.c.h.b16 %v301
    %v644 = vunpack.c.l.b16 %v302
    %v645 = vunpack.c.h.b16 %v302
    %v646 = vunpack.c.l.b16 %v303
    %v647 = vunpack.c.h.b16 %v303
    %v648 = vunpack.c.l.b16 %v304
    %v649 = vunpack.c.l.b16 %v305
    %v650 = vunpack.c.h.b16 %v305
    %v651 = vunpack.c.l.b16 %v306
    %v652 = vunpack.c.h.b16 %v306
    %v653 = vunpack.c.l.b16 %v307
    %v654 = vunpack.c.h.b16 %v307
    %v655 = vunpack.c.l.b16 %v308
    %v656 = vunpack.c.h.b16 %v308
    %v657 = vunpack.c.l.b16 %v309
    %v658 = vunpack.c.h.b16 %v309
    %v659 = vunpack.c.l.b16 %v310
    %v660 = vunpack.c.h.b16 %v310
    %v661 = vunpack.c.l.b16 %v311
    %v662 = vpack.c.b16 %v467, %v454
    %v663 = vpack.c.b16 %v468, %v455
    %v664 = vpack.c.b16 %v469, %v456
    %v665 = vpack.c.b16 %v470, %v457
    %v666 = vpack.c.b16 %v471, %v458
    %v667 = vpack.c.b16 %v472, %v459
    %v668 = vpack.c.b16 %v473, %v460
    %v669 = vpack.c.b16 %v474, %v461
    %v670 = vpack.c.b16 %v475, %v462
    %v671 = vpack.c.b16 %v476, %v463
    %v672 = vpack.c.b16 %v477, %v464
    %v673 = vpack.c.b16 %v478, %v465
    %v674 = vpack.c.b16 %v479, %v466
    %v675 = vpack.c.b16 %v493, %v480
    %v676 = vpack.c.b16 %v494, %v481
    %v677 = vpack.c.b16 %v495, %v482
    %v678 = vpack.c.b16 %v496, %v483
    %v679 = vpack.c.b16 %v497, %v484
    %v680 = vpack.c.b16 %v498, %v485
    %v681 = vpack.c.b16 %v499, %v486
    %v682 = vpack.c.b16 %v500, %v487
    %v683 = vpack.c.b16 %v501, %v488
    %v684 = vpack.c.b16 %v502, %v489
    %v685 = vpack.c.b16 %v503, %v490
    %v686 = vpack.c.b16 %v504, %v491
    %v687 = vpack.c.b16 %v505, %v492
    %v688 = vpack.c.b16 %v519, %v506
    %v689 = vpack.c.b16 %v520, %v507
    %v690 = vpack.c.b16 %v521, %v508
    %v691 = vpack.c.b16 %v522, %v509
    %v692 = vpack.c.b16 %v523, %v510
    %v693 = vpack.c.b16 %v524, %v511
    %v694 = vpack.c.b16 %v525, %v512
    %v695 = vpack.c.b16 %v526, %v513
    %v696 = vpack.c.b16 %v527, %v514
    %v697 = vpack.c.b16 %v528, %v515
    %v698 = vpack.c.b16 %v529, %v516
    %v699 = vpack.c.b16 %v530, %v517
    %v700 = vpack.c.b16 %v531, %v518
    %v701 = vpack.c.b16 %v545, %v532
    %v702 = vpack.c.b16 %v546, %v533
    %v703 = vpack.c.b16 %v547, %v534
    %v704 = vpack.c.b16 %v548, %v535
    %v705 = vpack.c.b16 %v549, %v536
    %v706 = vpack.c.b16 %v550, %v537
    %v707 = vpack.c.b16 %v551, %v538
    %v708 = vpack.c.b16 %v552, %v539
    %v709 = vpack.c.b16 %v553, %v540
    %v710 = vpack.c.b16 %v554, %v541
    %v711 = vpack.c.b16 %v555, %v542
    %v712 = vpack.c.b16 %v556, %v543
    %v713 = vpack.c.b16 %v557, %v544
    %v714 = vpack.c.b16 %v571, %v558
    %v715 = vpack.c.b16 %v572, %v559
    %v716 = vpack.c.b16 %v573, %v560
    %v717 = vpack.c.b16 %v574, %v561
    %v718 = vpack.c.b16 %v575, %v562
    %v719 = vpack.c.b16 %v576, %v563
    %v720 = vpack.c.b16 %v577, %v564
    %v721 = vpack.c.b16 %v578, %v565
    %v722 = vpack.c.b16 %v579, %v566
    %v723 = vpack.c.b16 %v580, %v567
    %v724 = vpack.c.b16 %v581, %v568
    %v725 = vpack.c.b16 %v582, %v569
    %v726 = vpack.c.b16 %v583, %v570
    %v727 = vpack.c.b16 %v597, %v584
    %v728 = vpack.c.b16 %v598, %v585
    %v729 = vpack.c.b16 %v599, %v586
    %v730 = vpack.c.b16 %v600, %v587
    %v731 = vpack.c.b16 %v601, %v588
    %v732 = vpack.c.b16 %v602, %v589
    %v733 = vpack.c.b16 %v603, %v590
    %v734 = vpack.c.b16 %v604, %v591
    %v735 = vpack.c.b16 %v605, %v592
    %v736 = vpack.c.b16 %v606, %v593
    %v737 = vpack.c.b16 %v607, %v594
    %v738 = vpack.c.b16 %v608, %v595
    %v739 = vpack.c.b16 %v609, %v596
    %v740 = vpack.c.b16 %v623, %v610
    %v741 = vpack.c.b16 %v624, %v611
    %v742 = vpack.c.b16 %v625, %v612
    %v743 = vpack.c.b16 %v626, %v613
    %v744 = vpack.c.b16 %v627, %v614
    %v745 = vpack.c.b16 %v628, %v615
    %v746 = vpack.c.b16 %v629, %v616
    %v747 = vpack.c.b16 %v630, %v617
    %v748 = vpack.c.b16 %v631, %v618
    %v749 = vpack.c.b16 %v632, %v619
    %v750 = vpack.c.b16 %v633, %v620
    %v751 = vpack.c.b16 %v634, %v621
    %v752 = vpack.c.b16 %v635, %v622
    %v753 = vpack.c.b16 %v649, %v636
    %v754 = vpack.c.b16 %v650, %v637
    %v755 = vpack.c.b16 %v651, %v638
    %v756 = vpack.c.b16 %v652, %v639
    %v757 = vpack.c.b16 %v653, %v640
    %v758 = vpack.c.b16 %v654, %v641
    %v759 = vpack.c.b16 %v655, %v642
    %v760 = vpack.c.b16 %v656, %v643
    %v761 = vpack.c.b16 %v657, %v644
    %v762 = vpack.c.b16 %v658, %v645
    %v763 = vpack.c.b16 %v659, %v646
    %v764 = vpack.c.b16 %v660, %v647
    %v765 = vpack.c.b16 %v661, %v648
    %870 = vmatpush.bf16.msra.mxu0 %v753
    %871 = vmatpush.bf16.msra.mxu0 %v740
    %872 = vmatpush.bf16.msra.mxu0 %v727
    %873 = vmatpush.bf16.msra.mxu0 %v714
    %874 = vmatpush.bf16.msra.mxu0 %v701
    %875 = vmatpush.bf16.msra.mxu0 %v688
    %876 = vmatpush.bf16.msra.mxu0 %v675
    %877 = vmatpush.bf16.msra.mxu0 %v662
    %878 = vmatmul.bf16.gmra.mxu0 %v199
    %v879 = vpop.f32.mrf.mxu0
    %v880 = vadd.f32 %v316, %v879
    %v881 = vpop.f32.mrf.mxu0
    %882 = vdwg.mxu0
    %883 = vmatpush.bf16.msra.mxu0 %v754
    %884 = vmatpush.bf16.msra.mxu0 %v741
    %885 = vmatpush.bf16.msra.mxu0 %v728
    %886 = vmatpush.bf16.msra.mxu0 %v715
    %887 = vmatpush.bf16.msra.mxu0 %v702
    %888 = vmatpush.bf16.msra.mxu0 %v689
    %889 = vmatpush.bf16.msra.mxu0 %v676
    %890 = vmatpush.bf16.msra.mxu0 %v663
    %891 = vmatmul.bf16.gmra.mxu0 %v199
    %v892 = vpop.f32.mrf.mxu0
    %v893 = vadd.f32 %v317, %v892
    %v894 = vpop.f32.mrf.mxu0
    %895 = vdwg.mxu0
    %896 = vmatpush.bf16.msra.mxu0 %v755
    %897 = vmatpush.bf16.msra.mxu0 %v742
    %898 = vmatpush.bf16.msra.mxu0 %v729
    %899 = vmatpush.bf16.msra.mxu0 %v716
    %900 = vmatpush.bf16.msra.mxu0 %v703
    %901 = vmatpush.bf16.msra.mxu0 %v690
    %902 = vmatpush.bf16.msra.mxu0 %v677
    %903 = vmatpush.bf16.msra.mxu0 %v664
    %904 = vmatmul.bf16.gmra.mxu0 %v199
    %v905 = vpop.f32.mrf.mxu0
    %v906 = vadd.f32 %v318, %v905
    %v907 = vpop.f32.mrf.mxu0
    %908 = vdwg.mxu0
    %909 = vmatpush.bf16.msra.mxu0 %v756
    %910 = vmatpush.bf16.msra.mxu0 %v743
    %911 = vmatpush.bf16.msra.mxu0 %v730
    %912 = vmatpush.bf16.msra.mxu0 %v717
    %913 = vmatpush.bf16.msra.mxu0 %v704
    %914 = vmatpush.bf16.msra.mxu0 %v691
    %915 = vmatpush.bf16.msra.mxu0 %v678
    %916 = vmatpush.bf16.msra.mxu0 %v665
    %917 = vmatmul.bf16.gmra.mxu0 %v199
    %v918 = vpop.f32.mrf.mxu0
    %v919 = vadd.f32 %v319, %v918
    %v920 = vpop.f32.mrf.mxu0
    %921 = vdwg.mxu0
    %922 = vmatpush.bf16.msra.mxu0 %v757
    %923 = vmatpush.bf16.msra.mxu0 %v744
    %924 = vmatpush.bf16.msra.mxu0 %v731
    %925 = vmatpush.bf16.msra.mxu0 %v718
    %926 = vmatpush.bf16.msra.mxu0 %v705
    %927 = vmatpush.bf16.msra.mxu0 %v692
    %928 = vmatpush.bf16.msra.mxu0 %v679
    %929 = vmatpush.bf16.msra.mxu0 %v666
    %930 = vmatmul.bf16.gmra.mxu0 %v199
    %v931 = vpop.f32.mrf.mxu0
    %v932 = vadd.f32 %v320, %v931
    %v933 = vpop.f32.mrf.mxu0
    %934 = vdwg.mxu0
    %935 = vmatpush.bf16.msra.mxu0 %v758
    %936 = vmatpush.bf16.msra.mxu0 %v745
    %937 = vmatpush.bf16.msra.mxu0 %v732
    %938 = vmatpush.bf16.msra.mxu0 %v719
    %939 = vmatpush.bf16.msra.mxu0 %v706
    %940 = vmatpush.bf16.msra.mxu0 %v693
    %941 = vmatpush.bf16.msra.mxu0 %v680
    %942 = vmatpush.bf16.msra.mxu0 %v667
    %943 = vmatmul.bf16.gmra.mxu0 %v199
    %v944 = vpop.f32.mrf.mxu0
    %v945 = vadd.f32 %v321, %v944
    %v946 = vpop.f32.mrf.mxu0
    %947 = vdwg.mxu0
    %948 = vmatpush.bf16.msra.mxu0 %v759
    %949 = vmatpush.bf16.msra.mxu0 %v746
    %950 = vmatpush.bf16.msra.mxu0 %v733
    %951 = vmatpush.bf16.msra.mxu0 %v720
    %952 = vmatpush.bf16.msra.mxu0 %v707
    %953 = vmatpush.bf16.msra.mxu0 %v694
    %954 = vmatpush.bf16.msra.mxu0 %v681
    %955 = vmatpush.bf16.msra.mxu0 %v668
    %956 = vmatmul.bf16.gmra.mxu0 %v199
    %v957 = vpop.f32.mrf.mxu0
    %v958 = vadd.f32 %v322, %v957
    %v959 = vpop.f32.mrf.mxu0
    %960 = vdwg.mxu0
    %961 = vmatpush.bf16.msra.mxu0 %v760
    %962 = vmatpush.bf16.msra.mxu0 %v747
    %963 = vmatpush.bf16.msra.mxu0 %v734
    %964 = vmatpush.bf16.msra.mxu0 %v721
    %965 = vmatpush.bf16.msra.mxu0 %v708
    %966 = vmatpush.bf16.msra.mxu0 %v695
    %967 = vmatpush.bf16.msra.mxu0 %v682
    %968 = vmatpush.bf16.msra.mxu0 %v669
    %969 = vmatmul.bf16.gmra.mxu0 %v199
    %v970 = vpop.f32.mrf.mxu0
    %v971 = vadd.f32 %v323, %v970
    %v972 = vpop.f32.mrf.mxu0
    %973 = vdwg.mxu0
    %974 = vmatpush.bf16.msra.mxu0 %v761
    %975 = vmatpush.bf16.msra.mxu0 %v748
    %976 = vmatpush.bf16.msra.mxu0 %v735
    %977 = vmatpush.bf16.msra.mxu0 %v722
    %978 = vmatpush.bf16.msra.mxu0 %v709
    %979 = vmatpush.bf16.msra.mxu0 %v696
    %980 = vmatpush.bf16.msra.mxu0 %v683
    %981 = vmatpush.bf16.msra.mxu0 %v670
    %982 = vmatmul.bf16.gmra.mxu0 %v199
    %v983 = vpop.f32.mrf.mxu0
    %v984 = vadd.f32 %v324, %v983
    %v985 = vpop.f32.mrf.mxu0
    %986 = vdwg.mxu0
    %987 = vmatpush.bf16.msra.mxu0 %v762
    %988 = vmatpush.bf16.msra.mxu0 %v749
    %989 = vmatpush.bf16.msra.mxu0 %v736
    %990 = vmatpush.bf16.msra.mxu0 %v723
    %991 = vmatpush.bf16.msra.mxu0 %v710
    %992 = vmatpush.bf16.msra.mxu0 %v697
    %993 = vmatpush.bf16.msra.mxu0 %v684
    %994 = vmatpush.bf16.msra.mxu0 %v671
    %995 = vmatmul.bf16.gmra.mxu0 %v199
    %v996 = vpop.f32.mrf.mxu0
    %v997 = vadd.f32 %v325, %v996
    %v998 = vpop.f32.mrf.mxu0
    %999 = vdwg.mxu0
    %1000 = vmatpush.bf16.msra.mxu0 %v763
    %1001 = vmatpush.bf16.msra.mxu0 %v750
    %1002 = vmatpush.bf16.msra.mxu0 %v737
    %1003 = vmatpush.bf16.msra.mxu0 %v724
    %1004 = vmatpush.bf16.msra.mxu0 %v711
    %1005 = vmatpush.bf16.msra.mxu0 %v698
    %1006 = vmatpush.bf16.msra.mxu0 %v685
    %1007 = vmatpush.bf16.msra.mxu0 %v672
    %1008 = vmatmul.bf16.gmra.mxu0 %v199
    %v1009 = vpop.f32.mrf.mxu0
    %v1010 = vadd.f32 %v326, %v1009
    %v1011 = vpop.f32.mrf.mxu0
    %1012 = vdwg.mxu0
    %1013 = vmatpush.bf16.msra.mxu0 %v764
    %1014 = vmatpush.bf16.msra.mxu0 %v751
    %1015 = vmatpush.bf16.msra.mxu0 %v738
    %1016 = vmatpush.bf16.msra.mxu0 %v725
    %1017 = vmatpush.bf16.msra.mxu0 %v712
    %1018 = vmatpush.bf16.msra.mxu0 %v699
    %1019 = vmatpush.bf16.msra.mxu0 %v686
    %1020 = vmatpush.bf16.msra.mxu0 %v673
    %1021 = vmatmul.bf16.gmra.mxu0 %v199
    %v1022 = vpop.f32.mrf.mxu0
    %v1023 = vadd.f32 %v327, %v1022
    %v1024 = vpop.f32.mrf.mxu0
    %1025 = vdwg.mxu0
    %1026 = vmatpush.bf16.msra.mxu0 %v765
    %1027 = vmatpush.bf16.msra.mxu0 %v752
    %1028 = vmatpush.bf16.msra.mxu0 %v739
    %1029 = vmatpush.bf16.msra.mxu0 %v726
    %1030 = vmatpush.bf16.msra.mxu0 %v713
    %1031 = vmatpush.bf16.msra.mxu0 %v700
    %1032 = vmatpush.bf16.msra.mxu0 %v687
    %1033 = vmatpush.bf16.msra.mxu0 %v674
    %1034 = vmatmul.bf16.gmra.mxu0 %v199
    %v1035 = vpop.f32.mrf.mxu0
    %v1036 = vadd.f32 %v328, %v1035
    %v1037 = vpop.f32.mrf.mxu0
    %1038 = vdwg.mxu0
    %v1039 = vmax.f32 %v880, 0.0
    %v1040 = vmax.f32 %v893, 0.0
    %v1041 = vmax.f32 %v906, 0.0
    %v1042 = vmax.f32 %v919, 0.0
    %v1043 = vmax.f32 %v932, 0.0
    %v1044 = vmax.f32 %v945, 0.0
    %v1045 = vmax.f32 %v958, 0.0
    %v1046 = vmax.f32 %v971, 0.0
    %v1047 = vmax.f32 %v984, 0.0
    %v1048 = vmax.f32 %v997, 0.0
    %v1049 = vmax.f32 %v1010, 0.0
    %v1050 = vmax.f32 %v1023, 0.0
    %v1051 = vmax.f32 %v1036, 0.0
    %v1064 = vrot.slane %v1040, 6
    %v1065 = vrot.slane %v1041, 4
    %v1066 = vrot.slane %v1042, 2
    %v1067 = vrot.slane %v1044, 6
    %v1068 = vrot.slane %v1045, 4
    %v1069 = vrot.slane %v1046, 2
    %v1070 = vrot.slane %v1048, 6
    %v1071 = vrot.slane %v1049, 4
    %v1072 = vrot.slane %v1050, 2
    %vm1073 = vcmask 1041408
    %v1074 = vsel %vm1073, %v1039, %v1064
    %vm1075 = vcmask 1045508
    %v1076 = vsel %vm1075, %v1065, %v1066
    %v1077 = vsel %vm174, %v1074, %v1076
    %v1078 = vsel %vm1073, %v1043, %v1067
    %v1079 = vsel %vm1075, %v1068, %v1069
    %v1080 = vsel %vm174, %v1078, %v1079
    %v1081 = vsel %vm1073, %v1047, %v1070
    %v1082 = vsel %vm1075, %v1071, %v1072
    %v1083 = vsel %vm174, %v1081, %v1082
    %1087 = vst [vmem:[#allocation2] sm:$0xff] %v1077
    %1088 = vst [vmem:[#allocation2 + $0x8] sm:$0xff] %v1080
    %1089 = vst [vmem:[#allocation2 + $0x10] sm:$0xff] %v1083
    %vm1090 = vcmask 254976
    %1091 = vst.msk [vmem:[#allocation2 + $0x18] sm:$0x3] %vm1090, %v1051
    %v1092 = vld [vmem:[#allocation2] sm:$0x3]
    %1093 = vst.msk [vmem:[#allocation3] sm:$0x3] %vm1090, %v1092
    %v1094 = vld [vmem:[#allocation2] sm:$0x3]
    %1096 = vst [vmem:[#allocation1] ss:$4 sm:$0xff] %v1094
    %v1097 = vld.sshfl [vmem:[#allocation1] sm:$0xff pattern:$0x73625140]
    %1098 = vrot.lane.b32.xlu0 %v1097, 96
    %v1099 = vpop.permute.xlu0 %1098
    %1101 = vst.msk [vmem:[#allocation3 + $0x2] sm:$0x3] %vm1090, %v1099
    %v1102 = vld [vmem:[#allocation2] sm:$0x3]
    %1104 = vst [vmem:[#allocation1] ss:$4 sm:$0xff] %v1102
    %v1105 = vld.sshfl [vmem:[#allocation1] sm:$0xff pattern:$0x73625140]
    %1106 = vrot.lane.b32.xlu0 %v1105, 64
    %v1107 = vpop.permute.xlu0 %1106
    %1109 = vst.msk [vmem:[#allocation3 + $0x4] sm:$0x3] %vm1090, %v1107
    %v1110 = vld [vmem:[#allocation2] sm:$0x3]
    %1112 = vst [vmem:[#allocation1] ss:$4 sm:$0xff] %v1110
    %v1113 = vld.sshfl [vmem:[#allocation1] sm:$0xff pattern:$0x73625140]
    %1114 = vrot.lane.b32.xlu0 %v1113, 32
    %v1115 = vpop.permute.xlu0 %1114
    %1117 = vst.msk [vmem:[#allocation3 + $0x6] sm:$0x3] %vm1090, %v1115
    %v1118 = vld [vmem:[#allocation2 + $0x2] sm:$0x3]
    %1119 = vst.msk [vmem:[#allocation3 + $0x8] sm:$0x3] %vm1090, %v1118
    %v1120 = vld [vmem:[#allocation2 + $0x2] sm:$0x3]
    %1122 = vst [vmem:[#allocation1] ss:$4 sm:$0xff] %v1120
    %v1123 = vld.sshfl [vmem:[#allocation1] sm:$0xff pattern:$0x73625140]
    %1124 = vrot.lane.b32.xlu0 %v1123, 96
    %v1125 = vpop.permute.xlu0 %1124
    %1127 = vst.msk [vmem:[#allocation3 + $0xa] sm:$0x3] %vm1090, %v1125
    %v1128 = vld [vmem:[#allocation2 + $0x2] sm:$0x3]
    %1130 = vst [vmem:[#allocation1] ss:$4 sm:$0xff] %v1128
    %v1131 = vld.sshfl [vmem:[#allocation1] sm:$0xff pattern:$0x73625140]
    %1132 = vrot.lane.b32.xlu0 %v1131, 64
    %v1133 = vpop.permute.xlu0 %1132
    %1135 = vst.msk [vmem:[#allocation3 + $0xc] sm:$0x3] %vm1090, %v1133
    %v1136 = vld [vmem:[#allocation2 + $0x2] sm:$0x3]
    %1138 = vst [vmem:[#allocation1] ss:$4 sm:$0xff] %v1136
    %v1139 = vld.sshfl [vmem:[#allocation1] sm:$0xff pattern:$0x73625140]
    %1140 = vrot.lane.b32.xlu0 %v1139, 32
    %v1141 = vpop.permute.xlu0 %1140
    %1143 = vst.msk [vmem:[#allocation3 + $0xe] sm:$0x3] %vm1090, %v1141
    %v1144 = vld [vmem:[#allocation2 + $0x4] sm:$0x3]
    %1145 = vst.msk [vmem:[#allocation3 + $0x10] sm:$0x3] %vm1090, %v1144
    %v1146 = vld [vmem:[#allocation2 + $0x4] sm:$0x3]
    %1148 = vst [vmem:[#allocation1] ss:$4 sm:$0xff] %v1146
    %v1149 = vld.sshfl [vmem:[#allocation1] sm:$0xff pattern:$0x73625140]
    %1150 = vrot.lane.b32.xlu0 %v1149, 96
    %v1151 = vpop.permute.xlu0 %1150
    %1153 = vst.msk [vmem:[#allocation3 + $0x12] sm:$0x3] %vm1090, %v1151
    %v1154 = vld [vmem:[#allocation2 + $0x4] sm:$0x3]
    %1156 = vst [vmem:[#allocation1] ss:$4 sm:$0xff] %v1154
    %v1157 = vld.sshfl [vmem:[#allocation1] sm:$0xff pattern:$0x73625140]
    %1158 = vrot.lane.b32.xlu0 %v1157, 64
    %v1159 = vpop.permute.xlu0 %1158
    %1161 = vst.msk [vmem:[#allocation3 + $0x14] sm:$0x3] %vm1090, %v1159
    %v1162 = vld [vmem:[#allocation2 + $0x4] sm:$0x3]
    %1164 = vst [vmem:[#allocation1] ss:$4 sm:$0xff] %v1162
    %v1165 = vld.sshfl [vmem:[#allocation1] sm:$0xff pattern:$0x73625140]
    %1166 = vrot.lane.b32.xlu0 %v1165, 32
    %v1167 = vpop.permute.xlu0 %1166
    %1169 = vst.msk [vmem:[#allocation3 + $0x16] sm:$0x3] %vm1090, %v1167
    %v1170 = vld [vmem:[#allocation2 + $0x6] sm:$0x3]
    %1171 = vst.msk [vmem:[#allocation3 + $0x18] sm:$0x3] %vm1090, %v1170
    %v1172 = vld [vmem:[#allocation2 + $0x6] sm:$0x3]
    %1174 = vst [vmem:[#allocation1] ss:$4 sm:$0xff] %v1172
    %v1175 = vld.sshfl [vmem:[#allocation1] sm:$0xff pattern:$0x73625140]
    %1176 = vrot.lane.b32.xlu0 %v1175, 96
    %v1177 = vpop.permute.xlu0 %1176
    %1179 = vst.msk [vmem:[#allocation3 + $0x1a] sm:$0x3] %vm1090, %v1177
    %v1180 = vld [vmem:[#allocation2 + $0x6] sm:$0x3]
    %1182 = vst [vmem:[#allocation1] ss:$4 sm:$0xff] %v1180
    %v1183 = vld.sshfl [vmem:[#allocation1] sm:$0xff pattern:$0x73625140]
    %1184 = vrot.lane.b32.xlu0 %v1183, 64
    %v1185 = vpop.permute.xlu0 %1184
    %1187 = vst.msk [vmem:[#allocation3 + $0x1c] sm:$0x3] %vm1090, %v1185
    %v1188 = vld [vmem:[#allocation2 + $0x6] sm:$0x3]
    %1190 = vst [vmem:[#allocation1] ss:$4 sm:$0xff] %v1188
    %v1191 = vld.sshfl [vmem:[#allocation1] sm:$0xff pattern:$0x73625140]
    %1192 = vrot.lane.b32.xlu0 %v1191, 32
    %v1193 = vpop.permute.xlu0 %1192
    %1195 = vst.msk [vmem:[#allocation3 + $0x1e] sm:$0x3] %vm1090, %v1193
    %v1196 = vld [vmem:[#allocation2 + $0x8] sm:$0x3]
    %1197 = vst.msk [vmem:[#allocation3 + $0x20] sm:$0x3] %vm1090, %v1196
    %v1198 = vld [vmem:[#allocation2 + $0x8] sm:$0x3]
    %1200 = vst [vmem:[#allocation1] ss:$4 sm:$0xff] %v1198
    %v1201 = vld.sshfl [vmem:[#allocation1] sm:$0xff pattern:$0x73625140]
    %1202 = vrot.lane.b32.xlu0 %v1201, 96
    %v1203 = vpop.permute.xlu0 %1202
    %1205 = vst.msk [vmem:[#allocation3 + $0x22] sm:$0x3] %vm1090, %v1203
    %v1206 = vld [vmem:[#allocation2 + $0x8] sm:$0x3]
    %1208 = vst [vmem:[#allocation1] ss:$4 sm:$0xff] %v1206
    %v1209 = vld.sshfl [vmem:[#allocation1] sm:$0xff pattern:$0x73625140]
    %1210 = vrot.lane.b32.xlu0 %v1209, 64
    %v1211 = vpop.permute.xlu0 %1210
    %1213 = vst.msk [vmem:[#allocation3 + $0x24] sm:$0x3] %vm1090, %v1211
    %v1214 = vld [vmem:[#allocation2 + $0x8] sm:$0x3]
    %1216 = vst [vmem:[#allocation1] ss:$4 sm:$0xff] %v1214
    %v1217 = vld.sshfl [vmem:[#allocation1] sm:$0xff pattern:$0x73625140]
    %1218 = vrot.lane.b32.xlu0 %v1217, 32
    %v1219 = vpop.permute.xlu0 %1218
    %1221 = vst.msk [vmem:[#allocation3 + $0x26] sm:$0x3] %vm1090, %v1219
    %v1222 = vld [vmem:[#allocation2 + $0xa] sm:$0x3]
    %1223 = vst.msk [vmem:[#allocation3 + $0x28] sm:$0x3] %vm1090, %v1222
    %v1224 = vld [vmem:[#allocation2 + $0xa] sm:$0x3]
    %1226 = vst [vmem:[#allocation1] ss:$4 sm:$0xff] %v1224
    %v1227 = vld.sshfl [vmem:[#allocation1] sm:$0xff pattern:$0x73625140]
    %1228 = vrot.lane.b32.xlu0 %v1227, 96
    %v1229 = vpop.permute.xlu0 %1228
    %1231 = vst.msk [vmem:[#allocation3 + $0x2a] sm:$0x3] %vm1090, %v1229
    %v1232 = vld [vmem:[#allocation2 + $0xa] sm:$0x3]
    %1234 = vst [vmem:[#allocation1] ss:$4 sm:$0xff] %v1232
    %v1235 = vld.sshfl [vmem:[#allocation1] sm:$0xff pattern:$0x73625140]
    %1236 = vrot.lane.b32.xlu0 %v1235, 64
    %v1237 = vpop.permute.xlu0 %1236
    %1239 = vst.msk [vmem:[#allocation3 + $0x2c] sm:$0x3] %vm1090, %v1237
    %v1240 = vld [vmem:[#allocation2 + $0xa] sm:$0x3]
    %1242 = vst [vmem:[#allocation1] ss:$4 sm:$0xff] %v1240
    %v1243 = vld.sshfl [vmem:[#allocation1] sm:$0xff pattern:$0x73625140]
    %1244 = vrot.lane.b32.xlu0 %v1243, 32
    %v1245 = vpop.permute.xlu0 %1244
    %1247 = vst.msk [vmem:[#allocation3 + $0x2e] sm:$0x3] %vm1090, %v1245
    %v1248 = vld [vmem:[#allocation2 + $0xc] sm:$0x3]
    %1249 = vst.msk [vmem:[#allocation3 + $0x30] sm:$0x3] %vm1090, %v1248
    %v1250 = vld [vmem:[#allocation2 + $0xc] sm:$0x3]
    %1252 = vst [vmem:[#allocation1] ss:$4 sm:$0xff] %v1250
    %v1253 = vld.sshfl [vmem:[#allocation1] sm:$0xff pattern:$0x73625140]
    %1254 = vrot.lane.b32.xlu0 %v1253, 96
    %v1255 = vpop.permute.xlu0 %1254
    %1257 = vst.msk [vmem:[#allocation3 + $0x32] sm:$0x3] %vm1090, %v1255
    %v1258 = vld [vmem:[#allocation2 + $0xc] sm:$0x3]
    %1260 = vst [vmem:[#allocation1] ss:$4 sm:$0xff] %v1258
    %v1261 = vld.sshfl [vmem:[#allocation1] sm:$0xff pattern:$0x73625140]
    %1262 = vrot.lane.b32.xlu0 %v1261, 64
    %v1263 = vpop.permute.xlu0 %1262
    %1265 = vst.msk [vmem:[#allocation3 + $0x34] sm:$0x3] %vm1090, %v1263
    %v1266 = vld [vmem:[#allocation2 + $0xc] sm:$0x3]
    %1268 = vst [vmem:[#allocation1] ss:$4 sm:$0xff] %v1266
    %v1269 = vld.sshfl [vmem:[#allocation1] sm:$0xff pattern:$0x73625140]
    %1270 = vrot.lane.b32.xlu0 %v1269, 32
    %v1271 = vpop.permute.xlu0 %1270
    %1273 = vst.msk [vmem:[#allocation3 + $0x36] sm:$0x3] %vm1090, %v1271
    %v1274 = vld [vmem:[#allocation2 + $0xe] sm:$0x3]
    %1275 = vst.msk [vmem:[#allocation3 + $0x38] sm:$0x3] %vm1090, %v1274
    %v1276 = vld [vmem:[#allocation2 + $0xe] sm:$0x3]
    %1278 = vst [vmem:[#allocation1] ss:$4 sm:$0xff] %v1276
    %v1279 = vld.sshfl [vmem:[#allocation1] sm:$0xff pattern:$0x73625140]
    %1280 = vrot.lane.b32.xlu0 %v1279, 96
    %v1281 = vpop.permute.xlu0 %1280
    %1283 = vst.msk [vmem:[#allocation3 + $0x3a] sm:$0x3] %vm1090, %v1281
    %v1284 = vld [vmem:[#allocation2 + $0xe] sm:$0x3]
    %1286 = vst [vmem:[#allocation1] ss:$4 sm:$0xff] %v1284
    %v1287 = vld.sshfl [vmem:[#allocation1] sm:$0xff pattern:$0x73625140]
    %1288 = vrot.lane.b32.xlu0 %v1287, 64
    %v1289 = vpop.permute.xlu0 %1288
    %1291 = vst.msk [vmem:[#allocation3 + $0x3c] sm:$0x3] %vm1090, %v1289
    %v1292 = vld [vmem:[#allocation2 + $0xe] sm:$0x3]
    %1294 = vst [vmem:[#allocation1] ss:$4 sm:$0xff] %v1292
    %v1295 = vld.sshfl [vmem:[#allocation1] sm:$0xff pattern:$0x73625140]
    %1296 = vrot.lane.b32.xlu0 %v1295, 32
    %v1297 = vpop.permute.xlu0 %1296
    %1299 = vst.msk [vmem:[#allocation3 + $0x3e] sm:$0x3] %vm1090, %v1297
    %v1300 = vld [vmem:[#allocation2 + $0x10] sm:$0x3]
    %1301 = vst.msk [vmem:[#allocation3 + $0x40] sm:$0x3] %vm1090, %v1300
    %v1302 = vld [vmem:[#allocation2 + $0x10] sm:$0x3]
    %1304 = vst [vmem:[#allocation1] ss:$4 sm:$0xff] %v1302
    %v1305 = vld.sshfl [vmem:[#allocation1] sm:$0xff pattern:$0x73625140]
    %1306 = vrot.lane.b32.xlu0 %v1305, 96
    %v1307 = vpop.permute.xlu0 %1306
    %1309 = vst.msk [vmem:[#allocation3 + $0x42] sm:$0x3] %vm1090, %v1307
    %v1310 = vld [vmem:[#allocation2 + $0x10] sm:$0x3]
    %1312 = vst [vmem:[#allocation1] ss:$4 sm:$0xff] %v1310
    %v1313 = vld.sshfl [vmem:[#allocation1] sm:$0xff pattern:$0x73625140]
    %1314 = vrot.lane.b32.xlu0 %v1313, 64
    %v1315 = vpop.permute.xlu0 %1314
    %1317 = vst.msk [vmem:[#allocation3 + $0x44] sm:$0x3] %vm1090, %v1315
    %v1318 = vld [vmem:[#allocation2 + $0x10] sm:$0x3]
    %1320 = vst [vmem:[#allocation1] ss:$4 sm:$0xff] %v1318
    %v1321 = vld.sshfl [vmem:[#allocation1] sm:$0xff pattern:$0x73625140]
    %1322 = vrot.lane.b32.xlu0 %v1321, 32
    %v1323 = vpop.permute.xlu0 %1322
    %1325 = vst.msk [vmem:[#allocation3 + $0x46] sm:$0x3] %vm1090, %v1323
    %v1326 = vld [vmem:[#allocation2 + $0x12] sm:$0x3]
    %1327 = vst.msk [vmem:[#allocation3 + $0x48] sm:$0x3] %vm1090, %v1326
    %v1328 = vld [vmem:[#allocation2 + $0x12] sm:$0x3]
    %1330 = vst [vmem:[#allocation1] ss:$4 sm:$0xff] %v1328
    %v1331 = vld.sshfl [vmem:[#allocation1] sm:$0xff pattern:$0x73625140]
    %1332 = vrot.lane.b32.xlu0 %v1331, 96
    %v1333 = vpop.permute.xlu0 %1332
    %1335 = vst.msk [vmem:[#allocation3 + $0x4a] sm:$0x3] %vm1090, %v1333
    %v1336 = vld [vmem:[#allocation2 + $0x12] sm:$0x3]
    %1338 = vst [vmem:[#allocation1] ss:$4 sm:$0xff] %v1336
    %v1339 = vld.sshfl [vmem:[#allocation1] sm:$0xff pattern:$0x73625140]
    %1340 = vrot.lane.b32.xlu0 %v1339, 64
    %v1341 = vpop.permute.xlu0 %1340
    %1343 = vst.msk [vmem:[#allocation3 + $0x4c] sm:$0x3] %vm1090, %v1341
    %v1344 = vld [vmem:[#allocation2 + $0x12] sm:$0x3]
    %1346 = vst [vmem:[#allocation1] ss:$4 sm:$0xff] %v1344
    %v1347 = vld.sshfl [vmem:[#allocation1] sm:$0xff pattern:$0x73625140]
    %1348 = vrot.lane.b32.xlu0 %v1347, 32
    %v1349 = vpop.permute.xlu0 %1348
    %1351 = vst.msk [vmem:[#allocation3 + $0x4e] sm:$0x3] %vm1090, %v1349
    %v1352 = vld [vmem:[#allocation2 + $0x14] sm:$0x3]
    %1353 = vst.msk [vmem:[#allocation3 + $0x50] sm:$0x3] %vm1090, %v1352
    %v1354 = vld [vmem:[#allocation2 + $0x14] sm:$0x3]
    %1356 = vst [vmem:[#allocation1] ss:$4 sm:$0xff] %v1354
    %v1357 = vld.sshfl [vmem:[#allocation1] sm:$0xff pattern:$0x73625140]
    %1358 = vrot.lane.b32.xlu0 %v1357, 96
    %v1359 = vpop.permute.xlu0 %1358
    %1361 = vst.msk [vmem:[#allocation3 + $0x52] sm:$0x3] %vm1090, %v1359
    %v1362 = vld [vmem:[#allocation2 + $0x14] sm:$0x3]
    %1364 = vst [vmem:[#allocation1] ss:$4 sm:$0xff] %v1362
    %v1365 = vld.sshfl [vmem:[#allocation1] sm:$0xff pattern:$0x73625140]
    %1366 = vrot.lane.b32.xlu0 %v1365, 64
    %v1367 = vpop.permute.xlu0 %1366
    %1369 = vst.msk [vmem:[#allocation3 + $0x54] sm:$0x3] %vm1090, %v1367
    %v1370 = vld [vmem:[#allocation2 + $0x14] sm:$0x3]
    %1372 = vst [vmem:[#allocation1] ss:$4 sm:$0xff] %v1370
    %v1373 = vld.sshfl [vmem:[#allocation1] sm:$0xff pattern:$0x73625140]
    %1374 = vrot.lane.b32.xlu0 %v1373, 32
    %v1375 = vpop.permute.xlu0 %1374
    %1377 = vst.msk [vmem:[#allocation3 + $0x56] sm:$0x3] %vm1090, %v1375
    %v1378 = vld [vmem:[#allocation2 + $0x16] sm:$0x3]
    %1379 = vst.msk [vmem:[#allocation3 + $0x58] sm:$0x3] %vm1090, %v1378
    %v1380 = vld [vmem:[#allocation2 + $0x16] sm:$0x3]
    %1382 = vst [vmem:[#allocation1] ss:$4 sm:$0xff] %v1380
    %v1383 = vld.sshfl [vmem:[#allocation1] sm:$0xff pattern:$0x73625140]
    %1384 = vrot.lane.b32.xlu0 %v1383, 96
    %v1385 = vpop.permute.xlu0 %1384
    %1387 = vst.msk [vmem:[#allocation3 + $0x5a] sm:$0x3] %vm1090, %v1385
    %v1388 = vld [vmem:[#allocation2 + $0x16] sm:$0x3]
    %1390 = vst [vmem:[#allocation1] ss:$4 sm:$0xff] %v1388
    %v1391 = vld.sshfl [vmem:[#allocation1] sm:$0xff pattern:$0x73625140]
    %1392 = vrot.lane.b32.xlu0 %v1391, 64
    %v1393 = vpop.permute.xlu0 %1392
    %1395 = vst.msk [vmem:[#allocation3 + $0x5c] sm:$0x3] %vm1090, %v1393
    %v1396 = vld [vmem:[#allocation2 + $0x16] sm:$0x3]
    %1398 = vst [vmem:[#allocation1] ss:$4 sm:$0xff] %v1396
    %v1399 = vld.sshfl [vmem:[#allocation1] sm:$0xff pattern:$0x73625140]
    %1400 = vrot.lane.b32.xlu0 %v1399, 32
    %v1401 = vpop.permute.xlu0 %1400
    %1403 = vst.msk [vmem:[#allocation3 + $0x5e] sm:$0x3] %vm1090, %v1401
    %v1404 = vld [vmem:[#allocation2 + $0x18] sm:$0x3]
    %1405 = vst.msk [vmem:[#allocation3 + $0x60] sm:$0x3] %vm1090, %v1404
    %v1406 = vld [vmem:[#allocation3] sm:$0xff]
    %v1407 = vld [vmem:[#allocation3 + $0x8] sm:$0xff]
    %v1408 = vld [vmem:[#allocation3 + $0x10] sm:$0xff]
    %v1409 = vld [vmem:[#allocation3 + $0x18] sm:$0xff]
    %v1410 = vld [vmem:[#allocation3 + $0x20] sm:$0xff]
    %v1411 = vld [vmem:[#allocation3 + $0x28] sm:$0xff]
    %v1412 = vld [vmem:[#allocation3 + $0x30] sm:$0xff]
    %v1413 = vld [vmem:[#allocation3 + $0x38] sm:$0xff]
    %v1414 = vld [vmem:[#allocation3 + $0x40] sm:$0xff]
    %v1415 = vld [vmem:[#allocation3 + $0x48] sm:$0xff]
    %v1416 = vld [vmem:[#allocation3 + $0x50] sm:$0xff]
    %v1417 = vld [vmem:[#allocation3 + $0x58] sm:$0xff]
    %v1418 = vld [vmem:[#allocation3 + $0x60] sm:$0x3]
    %v1419 = vld [vmem:[#allocation11] sm:$0xff]
    %v1420 = vld [vmem:[#allocation11 + $0x8] sm:$0xff]
    %v1421 = vld [vmem:[#allocation11 + $0x10] sm:$0xff]
    %v1422 = vld [vmem:[#allocation11 + $0x18] sm:$0xff]
    %v1423 = vld [vmem:[#allocation12] sm:$0x1]
    %v1425 = vperm.slane %v1423, 0
    %vm1427 = vcmask 261120
    %v1429 = vsel %vm1427, %v1406, 0
    %v1432 = vsel %vm1427, %v1407, 0
    %v1435 = vsel %vm1427, %v1408, 0
    %v1438 = vsel %vm1427, %v1409, 0
    %v1441 = vsel %vm1427, %v1410, 0
    %v1444 = vsel %vm1427, %v1411, 0
    %v1447 = vsel %vm1427, %v1412, 0
    %v1450 = vsel %vm1427, %v1413, 0
    %v1453 = vsel %vm1427, %v1414, 0
    %v1456 = vsel %vm1427, %v1415, 0
    %v1459 = vsel %vm1427, %v1416, 0
    %v1462 = vsel %vm1427, %v1417, 0
    %v1465 = vsel %vm1427, %v1418, 0
    %1467 = vmatpush.msra.mxu0 0.0
    %1468 = vmatpush.msra.mxu0 0.0
    %1469 = vmatpush.msra.mxu0 0.0
    %1470 = vmatpush.msra.mxu0 0.0
    %1471 = vmatpush.msra.mxu0 0.0
    %1472 = vmatpush.msra.mxu0 0.0
    %1473 = vmatpush.msra.mxu0 0.0
    %1474 = vmatpush.msra.mxu0 0.0
    %1475 = vmatpush.msra.mxu0 0.0
    %1476 = vmatpush.msra.mxu0 0.0
    %1477 = vmatpush.msra.mxu0 0.0
    %1478 = vmatpush.msra.mxu0 0.0
    %1479 = vmatpush.msra.mxu0 %v1422
    %1480 = vmatpush.msra.mxu0 %v1421
    %1481 = vmatpush.msra.mxu0 %v1420
    %1482 = vmatpush.msra.mxu0 %v1419
    %1483 = vmatmul.f32.gmra.mxu0 %v1429
    %v1484 = vpop.f32.mrf.mxu0
    %v1485 = vadd.f32 %v1425, %v1484
    %1486 = vmatmul.f32.gmra.mxu0 %v1432
    %v1487 = vpop.f32.mrf.mxu0
    %v1488 = vadd.f32 %v1425, %v1487
    %1489 = vmatmul.f32.gmra.mxu0 %v1435
    %v1490 = vpop.f32.mrf.mxu0
    %v1491 = vadd.f32 %v1425, %v1490
    %1492 = vmatmul.f32.gmra.mxu0 %v1438
    %v1493 = vpop.f32.mrf.mxu0
    %v1494 = vadd.f32 %v1425, %v1493
    %1495 = vmatmul.f32.gmra.mxu0 %v1441
    %v1496 = vpop.f32.mrf.mxu0
    %v1497 = vadd.f32 %v1425, %v1496
    %1498 = vmatmul.f32.gmra.mxu0 %v1444
    %v1499 = vpop.f32.mrf.mxu0
    %v1500 = vadd.f32 %v1425, %v1499
    %1501 = vmatmul.f32.gmra.mxu0 %v1447
    %v1502 = vpop.f32.mrf.mxu0
    %v1503 = vadd.f32 %v1425, %v1502
    %1504 = vmatmul.f32.gmra.mxu0 %v1450
    %v1505 = vpop.f32.mrf.mxu0
    %v1506 = vadd.f32 %v1425, %v1505
    %1507 = vmatmul.f32.gmra.mxu0 %v1453
    %v1508 = vpop.f32.mrf.mxu0
    %v1509 = vadd.f32 %v1425, %v1508
    %1510 = vmatmul.f32.gmra.mxu0 %v1456
    %v1511 = vpop.f32.mrf.mxu0
    %v1512 = vadd.f32 %v1425, %v1511
    %1513 = vmatmul.f32.gmra.mxu0 %v1459
    %v1514 = vpop.f32.mrf.mxu0
    %v1515 = vadd.f32 %v1425, %v1514
    %1516 = vmatmul.f32.gmra.mxu0 %v1462
    %v1517 = vpop.f32.mrf.mxu0
    %v1518 = vadd.f32 %v1425, %v1517
    %1519 = vmatmul.f32.gmra.mxu0 %v1465
    %v1520 = vpop.f32.mrf.mxu0
    %v1521 = vadd.f32 %v1425, %v1520
    %1522 = vdwg.mxu0
    %v1523 = vmax.f32 %v1485, 0.0
    %v1524 = vmax.f32 %v1488, 0.0
    %v1525 = vmax.f32 %v1491, 0.0
    %v1526 = vmax.f32 %v1494, 0.0
    %v1527 = vmax.f32 %v1497, 0.0
    %v1528 = vmax.f32 %v1500, 0.0
    %v1529 = vmax.f32 %v1503, 0.0
    %v1530 = vmax.f32 %v1506, 0.0
    %v1531 = vmax.f32 %v1509, 0.0
    %v1532 = vmax.f32 %v1512, 0.0
    %v1533 = vmax.f32 %v1515, 0.0
    %v1534 = vmax.f32 %v1518, 0.0
    %v1535 = vmax.f32 %v1521, 0.0
    %v1536 = vld [vmem:[#allocation14] sm:$0xff]
    %v1537 = vld [vmem:[#allocation14 + $0x8] sm:$0xff]
    %v1538 = vld [vmem:[#allocation14 + $0x10] sm:$0xff]
    %v1539 = vld [vmem:[#allocation14 + $0x18] sm:$0xff]
    %v1540 = vld [vmem:[#allocation14 + $0x20] sm:$0xff]
    %v1541 = vld [vmem:[#allocation14 + $0x28] sm:$0xff]
    %v1542 = vld [vmem:[#allocation14 + $0x30] sm:$0xff]
    %v1543 = vld [vmem:[#allocation14 + $0x38] sm:$0xff]
    %v1544 = vld [vmem:[#allocation15] sm:$0x1]
    %v1546 = vperm.slane %v1544, 0
    %vm1548 = vcmask 523264
    %v1550 = vsel %vm1548, %v1523, 0
    %v1553 = vsel %vm1548, %v1524, 0
    %v1556 = vsel %vm1548, %v1525, 0
    %v1559 = vsel %vm1548, %v1526, 0
    %v1562 = vsel %vm1548, %v1527, 0
    %v1565 = vsel %vm1548, %v1528, 0
    %v1568 = vsel %vm1548, %v1529, 0
    %v1571 = vsel %vm1548, %v1530, 0
    %v1574 = vsel %vm1548, %v1531, 0
    %v1577 = vsel %vm1548, %v1532, 0
    %v1580 = vsel %vm1548, %v1533, 0
    %v1583 = vsel %vm1548, %v1534, 0
    %v1586 = vsel %vm1548, %v1535, 0
    %1588 = vmatpush.msra.mxu0 0.0
    %1589 = vmatpush.msra.mxu0 0.0
    %1590 = vmatpush.msra.mxu0 0.0
    %1591 = vmatpush.msra.mxu0 0.0
    %1592 = vmatpush.msra.mxu0 0.0
    %1593 = vmatpush.msra.mxu0 0.0
    %1594 = vmatpush.msra.mxu0 0.0
    %1595 = vmatpush.msra.mxu0 0.0
    %1596 = vmatpush.msra.mxu0 %v1543
    %1597 = vmatpush.msra.mxu0 %v1542
    %1598 = vmatpush.msra.mxu0 %v1541
    %1599 = vmatpush.msra.mxu0 %v1540
    %1600 = vmatpush.msra.mxu0 %v1539
    %1601 = vmatpush.msra.mxu0 %v1538
    %1602 = vmatpush.msra.mxu0 %v1537
    %1603 = vmatpush.msra.mxu0 %v1536
    %1604 = vmatmul.f32.gmra.mxu0 %v1550
    %v1605 = vpop.f32.mrf.mxu0
    %v1606 = vadd.f32 %v1546, %v1605
    %1607 = vmatmul.f32.gmra.mxu0 %v1553
    %v1608 = vpop.f32.mrf.mxu0
    %v1609 = vadd.f32 %v1546, %v1608
    %1610 = vmatmul.f32.gmra.mxu0 %v1556
    %v1611 = vpop.f32.mrf.mxu0
    %v1612 = vadd.f32 %v1546, %v1611
    %1613 = vmatmul.f32.gmra.mxu0 %v1559
    %v1614 = vpop.f32.mrf.mxu0
    %v1615 = vadd.f32 %v1546, %v1614
    %1616 = vmatmul.f32.gmra.mxu0 %v1562
    %v1617 = vpop.f32.mrf.mxu0
    %v1618 = vadd.f32 %v1546, %v1617
    %1619 = vmatmul.f32.gmra.mxu0 %v1565
    %v1620 = vpop.f32.mrf.mxu0
    %v1621 = vadd.f32 %v1546, %v1620
    %1622 = vmatmul.f32.gmra.mxu0 %v1568
    %v1623 = vpop.f32.mrf.mxu0
    %v1624 = vadd.f32 %v1546, %v1623
    %1625 = vmatmul.f32.gmra.mxu0 %v1571
    %v1626 = vpop.f32.mrf.mxu0
    %v1627 = vadd.f32 %v1546, %v1626
    %1628 = vmatmul.f32.gmra.mxu0 %v1574
    %v1629 = vpop.f32.mrf.mxu0
    %v1630 = vadd.f32 %v1546, %v1629
    %1631 = vmatmul.f32.gmra.mxu0 %v1577
    %v1632 = vpop.f32.mrf.mxu0
    %v1633 = vadd.f32 %v1546, %v1632
    %1634 = vmatmul.f32.gmra.mxu0 %v1580
    %v1635 = vpop.f32.mrf.mxu0
    %v1636 = vadd.f32 %v1546, %v1635
    %1637 = vmatmul.f32.gmra.mxu0 %v1583
    %v1638 = vpop.f32.mrf.mxu0
    %v1639 = vadd.f32 %v1546, %v1638
    %1640 = vmatmul.f32.gmra.mxu0 %v1586
    %v1641 = vpop.f32.mrf.mxu0
    %v1642 = vadd.f32 %v1546, %v1641
    %1643 = vdwg.mxu0
    %v1644 = vmax.f32 %v1606, 0.0
    %v1645 = vmax.f32 %v1609, 0.0
    %v1646 = vmax.f32 %v1612, 0.0
    %v1647 = vmax.f32 %v1615, 0.0
    %v1648 = vmax.f32 %v1618, 0.0
    %v1649 = vmax.f32 %v1621, 0.0
    %v1650 = vmax.f32 %v1624, 0.0
    %v1651 = vmax.f32 %v1627, 0.0
    %v1652 = vmax.f32 %v1630, 0.0
    %v1653 = vmax.f32 %v1633, 0.0
    %v1654 = vmax.f32 %v1636, 0.0
    %v1655 = vmax.f32 %v1639, 0.0
    %v1656 = vmax.f32 %v1642, 0.0
    %v1657 = vld [vmem:[%s9] sm:$0xff]
    %v1658 = vld [vmem:[%s9 + $0x8] sm:$0xff]
    %v1659 = vld [vmem:[%s9 + $0x10] sm:$0xff]
    %v1660 = vld [vmem:[%s9 + $0x18] sm:$0xff]
    %v1661 = vld [vmem:[%s9 + $0x20] sm:$0xff]
    %v1662 = vld [vmem:[%s9 + $0x28] sm:$0xff]
    %v1663 = vld [vmem:[%s9 + $0x30] sm:$0xff]
    %v1664 = vld [vmem:[%s9 + $0x38] sm:$0xff]
    %v1665 = vld [vmem:[%s9 + $0x40] sm:$0xff]
    %v1666 = vld [vmem:[%s9 + $0x48] sm:$0xff]
    %v1667 = vld [vmem:[%s9 + $0x50] sm:$0xff]
    %v1668 = vld [vmem:[%s9 + $0x58] sm:$0xff]
    %v1669 = vld [vmem:[%s9 + $0x60] sm:$0xff]
    %v1670 = vld [vmem:[%s9 + $0x68] sm:$0xff]
    %v1671 = vld [vmem:[%s9 + $0x70] sm:$0xff]
    %v1672 = vld [vmem:[%s9 + $0x78] sm:$0xff]
    %v1673 = vld [vmem:[%s9 + $0x80] sm:$0xff]
    %v1674 = vld [vmem:[%s9 + $0x88] sm:$0xff]
    %v1675 = vld [vmem:[%s9 + $0x90] sm:$0xff]
    %v1676 = vld [vmem:[%s9 + $0x98] sm:$0xff]
    %v1677 = vld [vmem:[%s9 + $0xa0] sm:$0xff]
    %v1678 = vld [vmem:[%s9 + $0xa8] sm:$0xff]
    %v1679 = vld [vmem:[%s9 + $0xb0] sm:$0xff]
    %v1680 = vld [vmem:[%s9 + $0xb8] sm:$0xff]
    %v1681 = vld [vmem:[%s9 + $0xc0] sm:$0xff]
    %v1682 = vld [vmem:[%s9 + $0xc8] sm:$0xff]
    %v1683 = vld [vmem:[%s9 + $0xd0] sm:$0xff]
    %v1684 = vld [vmem:[%s9 + $0xd8] sm:$0xff]
    %v1685 = vld [vmem:[%s9 + $0xe0] sm:$0xff]
    %v1686 = vld [vmem:[%s9 + $0xe8] sm:$0xff]
    %v1687 = vld [vmem:[%s9 + $0xf0] sm:$0xff]
    %v1688 = vld [vmem:[%s9 + $0xf8] sm:$0xff]
    %v1689 = vld [vmem:[#allocation17] sm:$0x3]
    %v1691 = vperm.slane %v1689, 0
    %v1692 = vperm.slane %v1689, 1
    %1695 = vmatpush.msra.mxu0 %v1687
    %1696 = vmatpush.msra.mxu0 %v1685
    %1697 = vmatpush.msra.mxu0 %v1683
    %1698 = vmatpush.msra.mxu0 %v1681
    %1699 = vmatpush.msra.mxu0 %v1679
    %1700 = vmatpush.msra.mxu0 %v1677
    %1701 = vmatpush.msra.mxu0 %v1675
    %1702 = vmatpush.msra.mxu0 %v1673
    %1703 = vmatpush.msra.mxu0 %v1671
    %1704 = vmatpush.msra.mxu0 %v1669
    %1705 = vmatpush.msra.mxu0 %v1667
    %1706 = vmatpush.msra.mxu0 %v1665
    %1707 = vmatpush.msra.mxu0 %v1663
    %1708 = vmatpush.msra.mxu0 %v1661
    %1709 = vmatpush.msra.mxu0 %v1659
    %1710 = vmatpush.msra.mxu0 %v1657
    %1711 = vmatmul.f32.gmra.mxu0 %v1644
    %v1712 = vpop.f32.mrf.mxu0
    %v1713 = vadd.f32 %v1691, %v1712
    %1714 = vmatmul.f32.gmra.mxu0 %v1645
    %v1715 = vpop.f32.mrf.mxu0
    %v1716 = vadd.f32 %v1691, %v1715
    %1717 = vmatmul.f32.gmra.mxu0 %v1646
    %v1718 = vpop.f32.mrf.mxu0
    %v1719 = vadd.f32 %v1691, %v1718
    %1720 = vmatmul.f32.gmra.mxu0 %v1647
    %v1721 = vpop.f32.mrf.mxu0
    %v1722 = vadd.f32 %v1691, %v1721
    %1723 = vmatmul.f32.gmra.mxu0 %v1648
    %v1724 = vpop.f32.mrf.mxu0
    %v1725 = vadd.f32 %v1691, %v1724
    %1726 = vmatmul.f32.gmra.mxu0 %v1649
    %v1727 = vpop.f32.mrf.mxu0
    %v1728 = vadd.f32 %v1691, %v1727
    %1729 = vmatmul.f32.gmra.mxu0 %v1650
    %v1730 = vpop.f32.mrf.mxu0
    %v1731 = vadd.f32 %v1691, %v1730
    %1732 = vmatmul.f32.gmra.mxu0 %v1651
    %v1733 = vpop.f32.mrf.mxu0
    %v1734 = vadd.f32 %v1691, %v1733
    %1735 = vmatmul.f32.gmra.mxu0 %v1652
    %v1736 = vpop.f32.mrf.mxu0
    %v1737 = vadd.f32 %v1691, %v1736
    %1738 = vmatmul.f32.gmra.mxu0 %v1653
    %v1739 = vpop.f32.mrf.mxu0
    %v1740 = vadd.f32 %v1691, %v1739
    %1741 = vmatmul.f32.gmra.mxu0 %v1654
    %v1742 = vpop.f32.mrf.mxu0
    %v1743 = vadd.f32 %v1691, %v1742
    %1744 = vmatmul.f32.gmra.mxu0 %v1655
    %v1745 = vpop.f32.mrf.mxu0
    %v1746 = vadd.f32 %v1691, %v1745
    %1747 = vmatmul.f32.gmra.mxu0 %v1656
    %v1748 = vpop.f32.mrf.mxu0
    %v1749 = vadd.f32 %v1691, %v1748
    %1750 = vdwg.mxu0
    %1751 = vmatpush.msra.mxu0 %v1688
    %1752 = vmatpush.msra.mxu0 %v1686
    %1753 = vmatpush.msra.mxu0 %v1684
    %1754 = vmatpush.msra.mxu0 %v1682
    %1755 = vmatpush.msra.mxu0 %v1680
    %1756 = vmatpush.msra.mxu0 %v1678
    %1757 = vmatpush.msra.mxu0 %v1676
    %1758 = vmatpush.msra.mxu0 %v1674
    %1759 = vmatpush.msra.mxu0 %v1672
    %1760 = vmatpush.msra.mxu0 %v1670
    %1761 = vmatpush.msra.mxu0 %v1668
    %1762 = vmatpush.msra.mxu0 %v1666
    %1763 = vmatpush.msra.mxu0 %v1664
    %1764 = vmatpush.msra.mxu0 %v1662
    %1765 = vmatpush.msra.mxu0 %v1660
    %1766 = vmatpush.msra.mxu0 %v1658
    %1767 = vmatmul.f32.gmra.mxu0 %v1644
    %v1768 = vpop.f32.mrf.mxu0
    %v1769 = vadd.f32 %v1692, %v1768
    %1770 = vmatmul.f32.gmra.mxu0 %v1645
    %v1771 = vpop.f32.mrf.mxu0
    %v1772 = vadd.f32 %v1692, %v1771
    %1773 = vmatmul.f32.gmra.mxu0 %v1646
    %v1774 = vpop.f32.mrf.mxu0
    %v1775 = vadd.f32 %v1692, %v1774
    %1776 = vmatmul.f32.gmra.mxu0 %v1647
    %v1777 = vpop.f32.mrf.mxu0
    %v1778 = vadd.f32 %v1692, %v1777
    %1779 = vmatmul.f32.gmra.mxu0 %v1648
    %v1780 = vpop.f32.mrf.mxu0
    %v1781 = vadd.f32 %v1692, %v1780
    %1782 = vmatmul.f32.gmra.mxu0 %v1649
    %v1783 = vpop.f32.mrf.mxu0
    %v1784 = vadd.f32 %v1692, %v1783
    %1785 = vmatmul.f32.gmra.mxu0 %v1650
    %v1786 = vpop.f32.mrf.mxu0
    %v1787 = vadd.f32 %v1692, %v1786
    %1788 = vmatmul.f32.gmra.mxu0 %v1651
    %v1789 = vpop.f32.mrf.mxu0
    %v1790 = vadd.f32 %v1692, %v1789
    %1791 = vmatmul.f32.gmra.mxu0 %v1652
    %v1792 = vpop.f32.mrf.mxu0
    %v1793 = vadd.f32 %v1692, %v1792
    %1794 = vmatmul.f32.gmra.mxu0 %v1653
    %v1795 = vpop.f32.mrf.mxu0
    %v1796 = vadd.f32 %v1692, %v1795
    %1797 = vmatmul.f32.gmra.mxu0 %v1654
    %v1798 = vpop.f32.mrf.mxu0
    %v1799 = vadd.f32 %v1692, %v1798
    %1800 = vmatmul.f32.gmra.mxu0 %v1655
    %v1801 = vpop.f32.mrf.mxu0
    %v1802 = vadd.f32 %v1692, %v1801
    %1803 = vmatmul.f32.gmra.mxu0 %v1656
    %v1804 = vpop.f32.mrf.mxu0
    %v1805 = vadd.f32 %v1692, %v1804
    %1806 = vdwg.mxu0
    %v1807 = vmul.f32 %v1713, 0.5
    %v1808 = vmul.f32 %v1769, 0.5
    %v1809 = vmul.f32 %v1716, 0.5
    %v1810 = vmul.f32 %v1772, 0.5
    %v1811 = vmul.f32 %v1719, 0.5
    %v1812 = vmul.f32 %v1775, 0.5
    %v1813 = vmul.f32 %v1722, 0.5
    %v1814 = vmul.f32 %v1778, 0.5
    %v1815 = vmul.f32 %v1725, 0.5
    %v1816 = vmul.f32 %v1781, 0.5
    %v1817 = vmul.f32 %v1728, 0.5
    %v1818 = vmul.f32 %v1784, 0.5
    %v1819 = vmul.f32 %v1731, 0.5
    %v1820 = vmul.f32 %v1787, 0.5
    %v1821 = vmul.f32 %v1734, 0.5
    %v1822 = vmul.f32 %v1790, 0.5
    %v1823 = vmul.f32 %v1737, 0.5
    %v1824 = vmul.f32 %v1793, 0.5
    %v1825 = vmul.f32 %v1740, 0.5
    %v1826 = vmul.f32 %v1796, 0.5
    %v1827 = vmul.f32 %v1743, 0.5
    %v1828 = vmul.f32 %v1799, 0.5
    %v1829 = vmul.f32 %v1746, 0.5
    %v1830 = vmul.f32 %v1802, 0.5
    %v1831 = vmul.f32 %v1749, 0.5
    %v1832 = vmul.f32 %v1805, 0.5
    %v1833 = vtanh.pop %v1807
    %v1834 = vtanh.pop %v1808
    %v1835 = vtanh.pop %v1809
    %v1836 = vtanh.pop %v1810
    %v1837 = vtanh.pop %v1811
    %v1838 = vtanh.pop %v1812
    %v1839 = vtanh.pop %v1813
    %v1840 = vtanh.pop %v1814
    %v1841 = vtanh.pop %v1815
    %v1842 = vtanh.pop %v1816
    %v1843 = vtanh.pop %v1817
    %v1844 = vtanh.pop %v1818
    %v1845 = vtanh.pop %v1819
    %v1846 = vtanh.pop %v1820
    %v1847 = vtanh.pop %v1821
    %v1848 = vtanh.pop %v1822
    %v1849 = vtanh.pop %v1823
    %v1850 = vtanh.pop %v1824
    %v1851 = vtanh.pop %v1825
    %v1852 = vtanh.pop %v1826
    %v1853 = vtanh.pop %v1827
    %v1854 = vtanh.pop %v1828
    %v1855 = vtanh.pop %v1829
    %v1856 = vtanh.pop %v1830
    %v1857 = vtanh.pop %v1831
    %v1858 = vtanh.pop %v1832
    %v1859 = vadd.f32 %v1833, 1.0
    %v1860 = vadd.f32 %v1834, 1.0
    %v1861 = vadd.f32 %v1835, 1.0
    %v1862 = vadd.f32 %v1836, 1.0
    %v1863 = vadd.f32 %v1837, 1.0
    %v1864 = vadd.f32 %v1838, 1.0
    %v1865 = vadd.f32 %v1839, 1.0
    %v1866 = vadd.f32 %v1840, 1.0
    %v1867 = vadd.f32 %v1841, 1.0
    %v1868 = vadd.f32 %v1842, 1.0
    %v1869 = vadd.f32 %v1843, 1.0
    %v1870 = vadd.f32 %v1844, 1.0
    %v1871 = vadd.f32 %v1845, 1.0
    %v1872 = vadd.f32 %v1846, 1.0
    %v1873 = vadd.f32 %v1847, 1.0
    %v1874 = vadd.f32 %v1848, 1.0
    %v1875 = vadd.f32 %v1849, 1.0
    %v1876 = vadd.f32 %v1850, 1.0
    %v1877 = vadd.f32 %v1851, 1.0
    %v1878 = vadd.f32 %v1852, 1.0
    %v1879 = vadd.f32 %v1853, 1.0
    %v1880 = vadd.f32 %v1854, 1.0
    %v1881 = vadd.f32 %v1855, 1.0
    %v1882 = vadd.f32 %v1856, 1.0
    %v1883 = vadd.f32 %v1857, 1.0
    %v1884 = vadd.f32 %v1858, 1.0
    %v1885 = vmul.f32 %v1859, 0.5
    %v1886 = vmul.f32 %v1860, 0.5
    %v1887 = vmul.f32 %v1861, 0.5
    %v1888 = vmul.f32 %v1862, 0.5
    %v1889 = vmul.f32 %v1863, 0.5
    %v1890 = vmul.f32 %v1864, 0.5
    %v1891 = vmul.f32 %v1865, 0.5
    %v1892 = vmul.f32 %v1866, 0.5
    %v1893 = vmul.f32 %v1867, 0.5
    %v1894 = vmul.f32 %v1868, 0.5
    %v1895 = vmul.f32 %v1869, 0.5
    %v1896 = vmul.f32 %v1870, 0.5
    %v1897 = vmul.f32 %v1871, 0.5
    %v1898 = vmul.f32 %v1872, 0.5
    %v1899 = vmul.f32 %v1873, 0.5
    %v1900 = vmul.f32 %v1874, 0.5
    %v1901 = vmul.f32 %v1875, 0.5
    %v1902 = vmul.f32 %v1876, 0.5
    %v1903 = vmul.f32 %v1877, 0.5
    %v1904 = vmul.f32 %v1878, 0.5
    %v1905 = vmul.f32 %v1879, 0.5
    %v1906 = vmul.f32 %v1880, 0.5
    %v1907 = vmul.f32 %v1881, 0.5
    %v1908 = vmul.f32 %v1882, 0.5
    %v1909 = vmul.f32 %v1883, 0.5
    %v1910 = vmul.f32 %v1884, 0.5
    %1911 = vst [vmem:[%s11] sm:$0xff] %v1885
    %1912 = vst.msk [vmem:[%s11 + $0x8] sm:$0xff] %vm1548, %v1886
    %1913 = vst [vmem:[%s11 + $0x10] sm:$0xff] %v1887
    %1914 = vst.msk [vmem:[%s11 + $0x18] sm:$0xff] %vm1548, %v1888
    %1915 = vst [vmem:[%s11 + $0x20] sm:$0xff] %v1889
    %1916 = vst.msk [vmem:[%s11 + $0x28] sm:$0xff] %vm1548, %v1890
    %1917 = vst [vmem:[%s11 + $0x30] sm:$0xff] %v1891
    %1918 = vst.msk [vmem:[%s11 + $0x38] sm:$0xff] %vm1548, %v1892
    %1919 = vst [vmem:[%s11 + $0x40] sm:$0xff] %v1893
    %1920 = vst.msk [vmem:[%s11 + $0x48] sm:$0xff] %vm1548, %v1894
    %1921 = vst [vmem:[%s11 + $0x50] sm:$0xff] %v1895
    %1922 = vst.msk [vmem:[%s11 + $0x58] sm:$0xff] %vm1548, %v1896
    %1923 = vst [vmem:[%s11 + $0x60] sm:$0xff] %v1897
    %1924 = vst.msk [vmem:[%s11 + $0x68] sm:$0xff] %vm1548, %v1898
    %1925 = vst [vmem:[%s11 + $0x70] sm:$0xff] %v1899
    %1926 = vst.msk [vmem:[%s11 + $0x78] sm:$0xff] %vm1548, %v1900
    %1927 = vst [vmem:[%s11 + $0x80] sm:$0xff] %v1901
    %1928 = vst.msk [vmem:[%s11 + $0x88] sm:$0xff] %vm1548, %v1902
    %1929 = vst [vmem:[%s11 + $0x90] sm:$0xff] %v1903
    %1930 = vst.msk [vmem:[%s11 + $0x98] sm:$0xff] %vm1548, %v1904
    %1931 = vst [vmem:[%s11 + $0xa0] sm:$0xff] %v1905
    %1932 = vst.msk [vmem:[%s11 + $0xa8] sm:$0xff] %vm1548, %v1906
    %1933 = vst [vmem:[%s11 + $0xb0] sm:$0xff] %v1907
    %1934 = vst.msk [vmem:[%s11 + $0xb8] sm:$0xff] %vm1548, %v1908
    %1935 = vst [vmem:[%s11 + $0xc0] sm:$0x3] %v1909
    %vm1936 = vcmask 517120
    %1937 = vst.msk [vmem:[%s11 + $0xc8] sm:$0x3] %vm1936, %v1910
    // Predicated region
    $region82: #{decoder_forward.1} parent=1 // pred_check
      _
    $region83: #{decoder_forward.1} parent=1 // pred_check_branch
      %1939 = sbr.rel (0) target = $region85
    $region84: #{decoder_forward.1} parent=1 // pred_region
      _
    $region85: #{decoder_forward.1} parent=1 // pred_fallthru
      _
    // Predicated region
    $region86: #{decoder_forward.1} parent=1 // pred_check
      _
    $region87: #{decoder_forward.1} parent=1 // pred_check_branch
      %1941 = sbr.rel (0) target = $region89
    $region88: #{decoder_forward.1} parent=1 // pred_region
      _
    $region89: #{decoder_forward.1} parent=1 // pred_fallthru
      _
    %1942 = vsyncpa [#allocation5], 1
    %1943 = vsyncpa [#allocation7], 1
    %1944 = vsyncpa [#allocation10], 1
    %1945 = vsyncpa [#allocation13], 1
    %1946 = vsyncpa [#allocation16], 1

</llo_original>
